<compile_context>
chip_gen: v7x
topology: tpu7x:2x2x1
jax: 0.10.0
libtpu: 0.0.40
codegen_flags: <defaults>
</compile_context>

<pallas_src>
import functools

import jax
import jax.numpy as jnp
from jax.experimental import pallas as pl
from jax.experimental.pallas import tpu as pltpu

H = 128          # lane-dense padded width for hidden / output dims
MAX_TM = 4096    # batch-tile cap: double-buffered x/out tiles stay << VMEM everywhere


def _round_up(x, m):
    return ((x + m - 1) // m) * m


def _tensorcores_per_chip():
    """Crude chip detection: v7x exposes 2 TensorCores per chip, v5e/v6e have 1."""
    try:
        kind = jax.devices()[0].device_kind.lower()
    except Exception:
        return 1
    return 2 if "v7" in kind else 1


_CORES = _tensorcores_per_chip()


def mlp_kernel(x_ref, w1_ref, w_ref, b_ref, o_ref):
    # x_ref : (TM, F)        f32
    # w1_ref: (F, 128)       bf16   layer-1 weights, zero-padded
    # w_ref : (3, 128, 128)  bf16   layers 2..4 weights, zero-padded & stacked
    # b_ref : (4, 128)       f32    all biases, zero-padded & stacked
    # o_ref : (TM, 128)      f32
    b = b_ref[...]
    x = x_ref[...].astype(jnp.bfloat16)   # keep cast in-kernel (hidden under slack)

    h = jnp.dot(x, w1_ref[...], preferred_element_type=jnp.float32)
    h = jnp.maximum(h + b[0:1, :], 0.0)

    h = jnp.dot(h.astype(jnp.bfloat16), w_ref[0], preferred_element_type=jnp.float32)
    h = jnp.maximum(h + b[1:2, :], 0.0)

    h = jnp.dot(h.astype(jnp.bfloat16), w_ref[1], preferred_element_type=jnp.float32)
    h = jnp.maximum(h + b[2:3, :], 0.0)

    o = jnp.dot(h.astype(jnp.bfloat16), w_ref[2], preferred_element_type=jnp.float32)
    o_ref[...] = (o + b[3:4, :]).astype(o_ref.dtype)


def pack_params(params):
    """One-time packing of the 4 Linear layers into MXU-friendly padded tiles.

    params: [(w1, b1), ..., (w4, b4)] with w_i shaped (in, out) and b_i shaped
    (out,) (nn.Linear layout) or (1, out).  Call once at init; the result is
    passed unchanged into every mlp_forward call.
    """
    (w1, b1), (w2, b2), (w3, b3), (w4, b4) = params
    n_features = w1.shape[0]

    dims = [w1.shape[1], w2.shape[0], w2.shape[1], w3.shape[0], w3.shape[1],
            w4.shape[0], w4.shape[1]]
    assert all(d <= H for d in dims), (
        f"all hidden widths and n_output must be <= {H} for the 128-lane padding")
    assert (w2.shape[0] == w1.shape[1] and w3.shape[0] == w2.shape[1]
            and w4.shape[0] == w3.shape[1]), "layer shapes do not chain"

    def pad_w(w, rows, cols):
        # zero padding is inert through matmul + bias + ReLU
        return jnp.zeros((rows, cols), jnp.float32).at[:w.shape[0], :w.shape[1]].set(w)

    w1_p = pad_w(w1, n_features, H).astype(jnp.bfloat16)               # (F, 128)
    w_stack = jnp.stack(
        [pad_w(w2, H, H), pad_w(w3, H, H), pad_w(w4, H, H)]
    ).astype(jnp.bfloat16)                                             # (3, 128, 128)

    b_stack = jnp.zeros((4, H), jnp.float32)
    for i, b in enumerate((b1, b2, b3, b4)):
        b_vec = jnp.ravel(b)                                           # (n,) or (1,n)
        b_stack = b_stack.at[i, : b_vec.shape[0]].set(b_vec)           # (4, 128)

    return w1_p, w_stack, b_stack


@functools.partial(jax.jit, static_argnames=("n_output",))
def mlp_forward(x, packed, *, n_output):
    """Fused MLP forward.  `packed` must come from pack_params() (done once)."""
    w1_p, w_stack, b_stack = packed
    B, F = x.shape

    # --- batch tiling: fewest grid steps; one tile per TensorCore on v7x ------
    tiles = _CORES if (_CORES > 1 and B >= 2 * 256) else 1
    tm = -(-B // tiles)                                       # ceil-div
    tm = _round_up(tm, 256) if tm >= 256 else _round_up(tm, 8)
    tm = min(tm, MAX_TM)
    b_pad = _round_up(B, tm)
    if b_pad != B:                      # only materialize the pad when unavoidable
        x = jnp.zeros((b_pad, F), x.dtype).at[:B].set(x)
    grid = (b_pad // tm,)

    flops = 2 * b_pad * (F * H + 3 * H * H)
    bytes_accessed = (
        b_pad * F * 4            # x (f32)
        + F * H * 2              # w1 (bf16)
        + 3 * H * H * 2          # w2..w4 (bf16)
        + 4 * H * 4              # biases (f32)
        + b_pad * H * 4          # output (f32)
    )

    # VMEM use per step is < ~1 MB even at MAX_TM, well under every chip's
    # scoped-VMEM default (incl. v5e's 16 MiB), so no vmem_limit_bytes needed.
    out = pl.pallas_call(
        mlp_kernel,
        out_shape=jax.ShapeDtypeStruct((b_pad, H), jnp.float32),
        grid=grid,
        in_specs=[
            pl.BlockSpec((tm, F), lambda i: (i, 0)),        # x: one batch tile / step
            pl.BlockSpec((F, H), lambda i: (0, 0)),         # w1: VMEM-resident
            pl.BlockSpec((3, H, H), lambda i: (0, 0, 0)),   # w2..w4: VMEM-resident
            pl.BlockSpec((4, H), lambda i: (0, 0)),         # biases: VMEM-resident
        ],
        out_specs=pl.BlockSpec((tm, H), lambda i: (i, 0)),
        compiler_params=pltpu.CompilerParams(
            dimension_semantics=("parallel",)),
        cost_estimate=pl.CostEstimate(
            flops=flops, transcendentals=0, bytes_accessed=bytes_accessed),
    )(x, w1_p, w_stack, b_stack)

    return out[:B, :n_output]


def init_params(key, n_features, n_output):
    """Deterministic init mirroring nn.Linear: weights (in, out), biases (out,)."""
    dims = [n_features, 100, 50, 20, n_output]
    params = []
    for i in range(4):
        key, kw, kb = jax.random.split(key, 3)
        bound = 1.0 / jnp.sqrt(dims[i])
        w = jax.random.uniform(kw, (dims[i], dims[i + 1]), jnp.float32, -bound, bound)
        b = jax.random.uniform(kb, (dims[i + 1],), jnp.float32, -bound, bound)
        params.append((w, b))
    return params


def reference_forward_f32(x, params):
    h = x
    for i, (w, b) in enumerate(params):
        h = h @ w + b
        if i < 3:
            h = jnp.maximum(h, 0.0)
    return h


def reference_forward_bf16(x, params):
    # Same numerics as the kernel: bf16 operands, f32 accumulation.
    h = x
    for i, (w, b) in enumerate(params):
        h = jnp.dot(h.astype(jnp.bfloat16), w.astype(jnp.bfloat16),
                    preferred_element_type=jnp.float32) + b
        if i < 3:
            h = jnp.maximum(h, 0.0)
    return h


if __name__ == "__main__":
    key = jax.random.PRNGKey(0)
    n_features, n_output, batch = 32, 4, 512

    kx, kp = jax.random.split(key)
    x = jax.random.normal(kx, (batch, n_features), jnp.float32)
    params = init_params(kp, n_features, n_output)

    # One-time parameter packing (hoisted out of the per-call path).
    packed = jax.block_until_ready(pack_params(params))

    out = mlp_forward(x, packed, n_output=n_output)
    out = jax.block_until_ready(out)
    assert out.shape == (batch, n_output)

    ref_bf16 = reference_forward_bf16(x, params)   # same reduced-precision path
    ref_f32 = reference_forward_f32(x, params)     # full-precision semantics
    assert jnp.max(jnp.abs(out - ref_bf16)) < 1e-3, "mismatch vs bf16-path reference"
    assert jnp.max(jnp.abs(out - ref_f32)) < 5e-2, "mismatch vs f32 reference"

    print("KERNEL_OK")
</pallas_src>

<mosaic_0001>
module attributes {stable_mosaic.version = 11 : i64} {
  func.func @mlp_kernel(%arg0: i32, %arg1: memref<512x32xf32, #tpu.memory_space<vmem>>, %arg2: memref<32x128xbf16, #tpu.memory_space<vmem>>, %arg3: memref<3x128x128xbf16, #tpu.memory_space<vmem>>, %arg4: memref<4x128xf32, #tpu.memory_space<vmem>>, %arg5: memref<512x128xf32, #tpu.memory_space<vmem>>) attributes {dimension_semantics = [#tpu.dimension_semantics<parallel>], iteration_bounds = array<i64: 1>, scalar_prefetch = 0 : i64, scratch_operands = 0 : i64, tpu.core_type = #tpu.core_type<tc>, window_params = [{transform_indices = @transform_0, window_bounds = array<i64: 512, 32>}, {pipeline_mode = #tpu.pipeline_mode<synchronous>, transform_indices = @transform_1, window_bounds = array<i64: 32, 128>}, {pipeline_mode = #tpu.pipeline_mode<synchronous>, transform_indices = @transform_2, window_bounds = array<i64: 3, 128, 128>}, {pipeline_mode = #tpu.pipeline_mode<synchronous>, transform_indices = @transform_3, window_bounds = array<i64: 4, 128>}, {transform_indices = @transform_4, window_bounds = array<i64: 512, 128>}]} {
    %c0 = arith.constant 0 : index
    %c0_0 = arith.constant 0 : index
    %0 = vector.load %arg4[%c0, %c0_0] : memref<4x128xf32, #tpu.memory_space<vmem>>, vector<4x128xf32>
    %c0_1 = arith.constant 0 : index
    %c0_2 = arith.constant 0 : index
    %1 = vector.load %arg1[%c0_1, %c0_2] : memref<512x32xf32, #tpu.memory_space<vmem>>, vector<512x32xf32>
    %2 = arith.truncf %1 : vector<512x32xf32> to vector<512x32xbf16>
    %c0_3 = arith.constant 0 : index
    %c0_4 = arith.constant 0 : index
    %3 = vector.load %arg2[%c0_3, %c0_4] : memref<32x128xbf16, #tpu.memory_space<vmem>>, vector<32x128xbf16>
    %cst = arith.constant dense<0.000000e+00> : vector<512x128xf32>
    %4 = tpu.matmul %2, %3, %cst {dimension_numbers = #tpu.dot_dimension_numbers<[1], [0], [0], [1], [0, 0, 1, 1], [], []>} : vector<512x32xbf16>, vector<32x128xbf16>, vector<512x128xf32> -> vector<512x128xf32>
    %5 = vector.extract_strided_slice %0 {offsets = [0, 0], sizes = [1, 128], strides = [1, 1]} : vector<4x128xf32> to vector<1x128xf32>
    %6 = vector.broadcast %5 : vector<1x128xf32> to vector<512x128xf32>
    %7 = arith.addf %4, %6 : vector<512x128xf32>
    %cst_5 = arith.constant 0.000000e+00 : f32
    %8 = vector.broadcast %cst_5 : f32 to vector<512x128xf32>
    %9 = arith.maximumf %7, %8 : vector<512x128xf32>
    %10 = arith.truncf %9 : vector<512x128xf32> to vector<512x128xbf16>
    %c0_6 = arith.constant 0 : index
    %c0_7 = arith.constant 0 : index
    %c0_8 = arith.constant 0 : index
    %11 = vector.load %arg3[%c0_6, %c0_7, %c0_8] : memref<3x128x128xbf16, #tpu.memory_space<vmem>>, vector<1x128x128xbf16>
    %12 = vector.shape_cast %11 : vector<1x128x128xbf16> to vector<128x128xbf16>
    %cst_9 = arith.constant dense<0.000000e+00> : vector<512x128xf32>
    %13 = tpu.matmul %10, %12, %cst_9 {dimension_numbers = #tpu.dot_dimension_numbers<[1], [0], [0], [1], [0, 0, 1, 1], [], []>} : vector<512x128xbf16>, vector<128x128xbf16>, vector<512x128xf32> -> vector<512x128xf32>
    %14 = vector.extract_strided_slice %0 {offsets = [1, 0], sizes = [1, 128], strides = [1, 1]} : vector<4x128xf32> to vector<1x128xf32>
    %15 = vector.broadcast %14 : vector<1x128xf32> to vector<512x128xf32>
    %16 = arith.addf %13, %15 : vector<512x128xf32>
    %cst_10 = arith.constant 0.000000e+00 : f32
    %17 = vector.broadcast %cst_10 : f32 to vector<512x128xf32>
    %18 = arith.maximumf %16, %17 : vector<512x128xf32>
    %19 = arith.truncf %18 : vector<512x128xf32> to vector<512x128xbf16>
    %c1 = arith.constant 1 : index
    %c0_11 = arith.constant 0 : index
    %c0_12 = arith.constant 0 : index
    %20 = vector.load %arg3[%c1, %c0_11, %c0_12] : memref<3x128x128xbf16, #tpu.memory_space<vmem>>, vector<1x128x128xbf16>
    %21 = vector.shape_cast %20 : vector<1x128x128xbf16> to vector<128x128xbf16>
    %cst_13 = arith.constant dense<0.000000e+00> : vector<512x128xf32>
    %22 = tpu.matmul %19, %21, %cst_13 {dimension_numbers = #tpu.dot_dimension_numbers<[1], [0], [0], [1], [0, 0, 1, 1], [], []>} : vector<512x128xbf16>, vector<128x128xbf16>, vector<512x128xf32> -> vector<512x128xf32>
    %23 = vector.extract_strided_slice %0 {offsets = [2, 0], sizes = [1, 128], strides = [1, 1]} : vector<4x128xf32> to vector<1x128xf32>
    %24 = vector.broadcast %23 : vector<1x128xf32> to vector<512x128xf32>
    %25 = arith.addf %22, %24 : vector<512x128xf32>
    %cst_14 = arith.constant 0.000000e+00 : f32
    %26 = vector.broadcast %cst_14 : f32 to vector<512x128xf32>
    %27 = arith.maximumf %25, %26 : vector<512x128xf32>
    %28 = arith.truncf %27 : vector<512x128xf32> to vector<512x128xbf16>
    %c2 = arith.constant 2 : index
    %c0_15 = arith.constant 0 : index
    %c0_16 = arith.constant 0 : index
    %29 = vector.load %arg3[%c2, %c0_15, %c0_16] : memref<3x128x128xbf16, #tpu.memory_space<vmem>>, vector<1x128x128xbf16>
    %30 = vector.shape_cast %29 : vector<1x128x128xbf16> to vector<128x128xbf16>
    %cst_17 = arith.constant dense<0.000000e+00> : vector<512x128xf32>
    %31 = tpu.matmul %28, %30, %cst_17 {dimension_numbers = #tpu.dot_dimension_numbers<[1], [0], [0], [1], [0, 0, 1, 1], [], []>} : vector<512x128xbf16>, vector<128x128xbf16>, vector<512x128xf32> -> vector<512x128xf32>
    %32 = vector.extract_strided_slice %0 {offsets = [3, 0], sizes = [1, 128], strides = [1, 1]} : vector<4x128xf32> to vector<1x128xf32>
    %33 = vector.broadcast %32 : vector<1x128xf32> to vector<512x128xf32>
    %34 = arith.addf %31, %33 : vector<512x128xf32>
    %c0_18 = arith.constant 0 : index
    %c0_19 = arith.constant 0 : index
    %35 = vector.load %arg5[%c0_18, %c0_19] : memref<512x128xf32, #tpu.memory_space<vmem>>, vector<512x128xf32>
    tpu.vector_store %arg5[%c0_18, %c0_19], %34 {strides = array<i32>} : memref<512x128xf32, #tpu.memory_space<vmem>>, vector<512x128xf32>,
    return
  }
  func.func @transform_0(%arg0: i32) -> (i32, i32) {
    %c0_i32 = arith.constant 0 : i32
    %c0_i32_0 = arith.constant 0 : i32
    return %arg0, %c0_i32 : i32, i32
  }
  func.func @transform_1(%arg0: i32) -> (i32, i32) {
    %c0_i32 = arith.constant 0 : i32
    %c0_i32_0 = arith.constant 0 : i32
    %c0_i32_1 = arith.constant 0 : i32
    return %c0_i32, %c0_i32_0 : i32, i32
  }
  func.func @transform_2(%arg0: i32) -> (i32, i32, i32) {
    %c0_i32 = arith.constant 0 : i32
    %c0_i32_0 = arith.constant 0 : i32
    %c0_i32_1 = arith.constant 0 : i32
    %c0_i32_2 = arith.constant 0 : i32
    return %c0_i32, %c0_i32_0, %c0_i32_1 : i32, i32, i32
  }
  func.func @transform_3(%arg0: i32) -> (i32, i32) {
    %c0_i32 = arith.constant 0 : i32
    %c0_i32_0 = arith.constant 0 : i32
    %c0_i32_1 = arith.constant 0 : i32
    return %c0_i32, %c0_i32_0 : i32, i32
  }
  func.func @transform_4(%arg0: i32) -> (i32, i32) {
    %c0_i32 = arith.constant 0 : i32
    %c0_i32_0 = arith.constant 0 : i32
    return %arg0, %c0_i32 : i32, i32
  }
}

</mosaic_0001>

<llo_original>
// kernel: mlp_forward.1
$region0: #{mlp_forward.1}
  #allocation0 [shape = 'u32[]', space=smem, size = 0x4, offset = 0x4, fixed_abs, tag = 'smem constant byte address 0x4 - core index']
  #allocation1 [shape = 'u32[144,128]{1,0:T(1,128)}', space=vmem, size = 0x12000, scoped, tag = 'internal scratch']
  %s0 = inlined_call_operand.vmem [shape: f32[512,32], index: 0, kind: input, shape index: {}]
  %s1 = inlined_call_operand.vmem [shape: bf16[32,128], index: 1, kind: input, shape index: {}]
  %s2 = inlined_call_operand.vmem [shape: bf16[3,128,128], index: 2, kind: input, shape index: {}]
  %s3 = inlined_call_operand.vmem [shape: f32[4,128], index: 3, kind: input, shape index: {}]
  %s4 = inlined_call_operand.vmem [shape: f32[512,128], index: 4, kind: output, shape index: {}]
  %s5 = sld [smem:[#allocation0]]
  $region26: #{mlp_forward.1} parent=0
    _
  %s7 = ssub.s32 1, %s5
  %s8 = scalar_select 0, %s7, %s5
  // Predicated region
  $region2: #{mlp_forward.1} parent=0 // pred_check
    _
  $region3: #{mlp_forward.1} parent=0 // pred_check_branch
    %10 = sbr.rel (0) target = $region5
  $region4: #{mlp_forward.1} parent=0 // pred_region
    _
  $region5: #{mlp_forward.1} parent=0 // pred_fallthru
    _
  // Predicated region
  $region6: #{mlp_forward.1} parent=0 // pred_check
    _
  $region7: #{mlp_forward.1} parent=0 // pred_check_branch
    %12 = sbr.rel (0) target = $region9
  $region8: #{mlp_forward.1} parent=0 // pred_region
    _
  $region9: #{mlp_forward.1} parent=0 // pred_fallthru
    _
  // Predicated region
  $region10: #{mlp_forward.1} parent=0 // pred_check
    _
  $region11: #{mlp_forward.1} parent=0 // pred_check_branch
    %14 = sbr.rel (0) target = $region13
  $region12: #{mlp_forward.1} parent=0 // pred_region
    _
  $region13: #{mlp_forward.1} parent=0 // pred_fallthru
    _
  // Predicated region
  $region14: #{mlp_forward.1} parent=0 // pred_check
    _
  $region15: #{mlp_forward.1} parent=0 // pred_check_branch
    %16 = sbr.rel (0) target = $region17
  $region16: #{mlp_forward.1} parent=0 // pred_region
    _
  $region17: #{mlp_forward.1} parent=0 // pred_fallthru
    _
  %v18 = vld [vmem:[%s3] sm:$0xf]
  %v19 = vld [vmem:[%s0] sm:$0xff]
  %v20 = vld [vmem:[%s0 + $0x8] sm:$0xff]
  %v21 = vld [vmem:[%s0 + $0x10] sm:$0xff]
  %v22 = vld [vmem:[%s0 + $0x18] sm:$0xff]
  %v23 = vld [vmem:[%s0 + $0x20] sm:$0xff]
  %v24 = vld [vmem:[%s0 + $0x28] sm:$0xff]
  %v25 = vld [vmem:[%s0 + $0x30] sm:$0xff]
  %v26 = vld [vmem:[%s0 + $0x38] sm:$0xff]
  %v27 = vld [vmem:[%s0 + $0x40] sm:$0xff]
  %v28 = vld [vmem:[%s0 + $0x48] sm:$0xff]
  %v29 = vld [vmem:[%s0 + $0x50] sm:$0xff]
  %v30 = vld [vmem:[%s0 + $0x58] sm:$0xff]
  %v31 = vld [vmem:[%s0 + $0x60] sm:$0xff]
  %v32 = vld [vmem:[%s0 + $0x68] sm:$0xff]
  %v33 = vld [vmem:[%s0 + $0x70] sm:$0xff]
  %v34 = vld [vmem:[%s0 + $0x78] sm:$0xff]
  %v35 = vld [vmem:[%s0 + $0x80] sm:$0xff]
  %v36 = vld [vmem:[%s0 + $0x88] sm:$0xff]
  %v37 = vld [vmem:[%s0 + $0x90] sm:$0xff]
  %v38 = vld [vmem:[%s0 + $0x98] sm:$0xff]
  %v39 = vld [vmem:[%s0 + $0xa0] sm:$0xff]
  %v40 = vld [vmem:[%s0 + $0xa8] sm:$0xff]
  %v41 = vld [vmem:[%s0 + $0xb0] sm:$0xff]
  %v42 = vld [vmem:[%s0 + $0xb8] sm:$0xff]
  %v43 = vld [vmem:[%s0 + $0xc0] sm:$0xff]
  %v44 = vld [vmem:[%s0 + $0xc8] sm:$0xff]
  %v45 = vld [vmem:[%s0 + $0xd0] sm:$0xff]
  %v46 = vld [vmem:[%s0 + $0xd8] sm:$0xff]
  %v47 = vld [vmem:[%s0 + $0xe0] sm:$0xff]
  %v48 = vld [vmem:[%s0 + $0xe8] sm:$0xff]
  %v49 = vld [vmem:[%s0 + $0xf0] sm:$0xff]
  %v50 = vld [vmem:[%s0 + $0xf8] sm:$0xff]
  %v51 = vld [vmem:[%s0 + $0x100] sm:$0xff]
  %v52 = vld [vmem:[%s0 + $0x108] sm:$0xff]
  %v53 = vld [vmem:[%s0 + $0x110] sm:$0xff]
  %v54 = vld [vmem:[%s0 + $0x118] sm:$0xff]
  %v55 = vld [vmem:[%s0 + $0x120] sm:$0xff]
  %v56 = vld [vmem:[%s0 + $0x128] sm:$0xff]
  %v57 = vld [vmem:[%s0 + $0x130] sm:$0xff]
  %v58 = vld [vmem:[%s0 + $0x138] sm:$0xff]
  %v59 = vld [vmem:[%s0 + $0x140] sm:$0xff]
  %v60 = vld [vmem:[%s0 + $0x148] sm:$0xff]
  %v61 = vld [vmem:[%s0 + $0x150] sm:$0xff]
  %v62 = vld [vmem:[%s0 + $0x158] sm:$0xff]
  %v63 = vld [vmem:[%s0 + $0x160] sm:$0xff]
  %v64 = vld [vmem:[%s0 + $0x168] sm:$0xff]
  %v65 = vld [vmem:[%s0 + $0x170] sm:$0xff]
  %v66 = vld [vmem:[%s0 + $0x178] sm:$0xff]
  %v67 = vld [vmem:[%s0 + $0x180] sm:$0xff]
  %v68 = vld [vmem:[%s0 + $0x188] sm:$0xff]
  %v69 = vld [vmem:[%s0 + $0x190] sm:$0xff]
  %v70 = vld [vmem:[%s0 + $0x198] sm:$0xff]
  %v71 = vld [vmem:[%s0 + $0x1a0] sm:$0xff]
  %v72 = vld [vmem:[%s0 + $0x1a8] sm:$0xff]
  %v73 = vld [vmem:[%s0 + $0x1b0] sm:$0xff]
  %v74 = vld [vmem:[%s0 + $0x1b8] sm:$0xff]
  %v75 = vld [vmem:[%s0 + $0x1c0] sm:$0xff]
  %v76 = vld [vmem:[%s0 + $0x1c8] sm:$0xff]
  %v77 = vld [vmem:[%s0 + $0x1d0] sm:$0xff]
  %v78 = vld [vmem:[%s0 + $0x1d8] sm:$0xff]
  %v79 = vld [vmem:[%s0 + $0x1e0] sm:$0xff]
  %v80 = vld [vmem:[%s0 + $0x1e8] sm:$0xff]
  %v81 = vld [vmem:[%s0 + $0x1f0] sm:$0xff]
  %v82 = vld [vmem:[%s0 + $0x1f8] sm:$0xff]
  %v83 = vpack.c.bf16 %v20, %v19
  %v84 = vpack.c.bf16 %v22, %v21
  %v85 = vpack.c.bf16 %v24, %v23
  %v86 = vpack.c.bf16 %v26, %v25
  %v87 = vpack.c.bf16 %v28, %v27
  %v88 = vpack.c.bf16 %v30, %v29
  %v89 = vpack.c.bf16 %v32, %v31
  %v90 = vpack.c.bf16 %v34, %v33
  %v91 = vpack.c.bf16 %v36, %v35
  %v92 = vpack.c.bf16 %v38, %v37
  %v93 = vpack.c.bf16 %v40, %v39
  %v94 = vpack.c.bf16 %v42, %v41
  %v95 = vpack.c.bf16 %v44, %v43
  %v96 = vpack.c.bf16 %v46, %v45
  %v97 = vpack.c.bf16 %v48, %v47
  %v98 = vpack.c.bf16 %v50, %v49
  %v99 = vpack.c.bf16 %v52, %v51
  %v100 = vpack.c.bf16 %v54, %v53
  %v101 = vpack.c.bf16 %v56, %v55
  %v102 = vpack.c.bf16 %v58, %v57
  %v103 = vpack.c.bf16 %v60, %v59
  %v104 = vpack.c.bf16 %v62, %v61
  %v105 = vpack.c.bf16 %v64, %v63
  %v106 = vpack.c.bf16 %v66, %v65
  %v107 = vpack.c.bf16 %v68, %v67
  %v108 = vpack.c.bf16 %v70, %v69
  %v109 = vpack.c.bf16 %v72, %v71
  %v110 = vpack.c.bf16 %v74, %v73
  %v111 = vpack.c.bf16 %v76, %v75
  %v112 = vpack.c.bf16 %v78, %v77
  %v113 = vpack.c.bf16 %v80, %v79
  %v114 = vpack.c.bf16 %v82, %v81
  %v115 = vld [vmem:[%s1] sm:$0xf]
  %v116 = vld [vmem:[%s1 + $0x4] sm:$0xf]
  %v117 = vld [vmem:[%s1 + $0x8] sm:$0xf]
  %v118 = vld [vmem:[%s1 + $0xc] sm:$0xf]
  %v119 = vlaneseq
  %v120 = vshrl.u32 %v119, 7
  %v121 = vsub.s32 0, %v120
  %v122 = vrot.slane %v18, %v121
  %v127 = vunpack.c.l.b16 %v115
  %v128 = vunpack.c.l.b16 %v116
  %v129 = vunpack.c.l.b16 %v117
  %v130 = vunpack.c.l.b16 %v118
  %v131 = vpack.c.b16 %v128, %v127
  %v132 = vpack.c.b16 %v130, %v129
  %vm135 = vcmask 261120
  %v137 = vsel %vm135, %v83, 0
  %v140 = vsel %vm135, %v84, 0
  %v143 = vsel %vm135, %v85, 0
  %v146 = vsel %vm135, %v86, 0
  %v149 = vsel %vm135, %v87, 0
  %v152 = vsel %vm135, %v88, 0
  %v155 = vsel %vm135, %v89, 0
  %v158 = vsel %vm135, %v90, 0
  %v161 = vsel %vm135, %v91, 0
  %v164 = vsel %vm135, %v92, 0
  %v167 = vsel %vm135, %v93, 0
  %v170 = vsel %vm135, %v94, 0
  %v173 = vsel %vm135, %v95, 0
  %v176 = vsel %vm135, %v96, 0
  %v179 = vsel %vm135, %v97, 0
  %v182 = vsel %vm135, %v98, 0
  %v185 = vsel %vm135, %v99, 0
  %v188 = vsel %vm135, %v100, 0
  %v191 = vsel %vm135, %v101, 0
  %v194 = vsel %vm135, %v102, 0
  %v197 = vsel %vm135, %v103, 0
  %v200 = vsel %vm135, %v104, 0
  %v203 = vsel %vm135, %v105, 0
  %v206 = vsel %vm135, %v106, 0
  %v209 = vsel %vm135, %v107, 0
  %v212 = vsel %vm135, %v108, 0
  %v215 = vsel %vm135, %v109, 0
  %v218 = vsel %vm135, %v110, 0
  %v221 = vsel %vm135, %v111, 0
  %v224 = vsel %vm135, %v112, 0
  %v227 = vsel %vm135, %v113, 0
  %v230 = vsel %vm135, %v114, 0
  %232 = vmatprep.subr.bf16.mxu0 0
  %233 = vmatpush1.bf16.msra.mxu0 %v131
  %234 = vmatprep.subr.bf16.mxu0 0
  %235 = vmatpush1.bf16.msra.mxu0 %v132
  %236 = vmatprep.subr.bf16.mxu0 0
  %237 = vmatpush1.bf16.msra.mxu0 0
  %238 = vmatprep.subr.bf16.mxu0 0
  %239 = vmatpush1.bf16.msra.mxu0 0
  %240 = vmatprep.subr.bf16.mxu0 0
  %241 = vmatpush1.bf16.msra.mxu0 0
  %242 = vmatprep.subr.bf16.mxu0 0
  %243 = vmatpush1.bf16.msra.mxu0 0
  %244 = vmatprep.subr.bf16.mxu0 0
  %245 = vmatpush1.bf16.msra.mxu0 0
  %246 = vmatprep.subr.bf16.mxu0 0
  %247 = vmatpush1.bf16.msra.mxu0 0
  %248 = vmatprep.subr.bf16.mxu0 0
  %249 = vmatpush1.bf16.msra.mxu0 0
  %250 = vmatprep.subr.bf16.mxu0 0
  %251 = vmatpush1.bf16.msra.mxu0 0
  %252 = vmatprep.subr.bf16.mxu0 0
  %253 = vmatpush1.bf16.msra.mxu0 0
  %254 = vmatprep.subr.bf16.mxu0 0
  %255 = vmatpush1.bf16.msra.mxu0 0
  %256 = vmatprep.subr.bf16.mxu0 0
  %257 = vmatpush1.bf16.msra.mxu0 0
  %258 = vmatprep.subr.bf16.mxu0 0
  %259 = vmatpush1.bf16.msra.mxu0 0
  %260 = vmatprep.subr.bf16.mxu0 0
  %261 = vmatpush1.bf16.msra.mxu0 0
  %262 = vmatprep.subr.bf16.mxu0 0
  %263 = vmatpush1.bf16.msra.mxu0 0
  %264 = vmatprep.mubr.bf16.mxu0 0
  %265 = vmatmul.mubr.bf16.gmra.mrb[0].mxu0 %v137
  %v266 = vpop.f32.mrb[0].mxu0
  %v267 = vadd.f32 %v122, %v266
  %v268 = vpop.f32.mrb[0].mxu0
  %v269 = vpop.f32.mrb[0].mxu0
  %v270 = vadd.f32 %v122, %v269
  %v271 = vpop.f32.mrb[0].mxu0
  %272 = vmatprep.mubr.bf16.mxu0 0
  %273 = vmatmul.mubr.bf16.gmra.mrb[0].mxu0 %v140
  %v274 = vpop.f32.mrb[0].mxu0
  %v275 = vadd.f32 %v122, %v274
  %v276 = vpop.f32.mrb[0].mxu0
  %v277 = vpop.f32.mrb[0].mxu0
  %v278 = vadd.f32 %v122, %v277
  %v279 = vpop.f32.mrb[0].mxu0
  %280 = vmatprep.mubr.bf16.mxu0 0
  %281 = vmatmul.mubr.bf16.gmra.mrb[0].mxu0 %v143
  %v282 = vpop.f32.mrb[0].mxu0
  %v283 = vadd.f32 %v122, %v282
  %v284 = vpop.f32.mrb[0].mxu0
  %v285 = vpop.f32.mrb[0].mxu0
  %v286 = vadd.f32 %v122, %v285
  %v287 = vpop.f32.mrb[0].mxu0
  %288 = vmatprep.mubr.bf16.mxu0 0
  %289 = vmatmul.mubr.bf16.gmra.mrb[0].mxu0 %v146
  %v290 = vpop.f32.mrb[0].mxu0
  %v291 = vadd.f32 %v122, %v290
  %v292 = vpop.f32.mrb[0].mxu0
  %v293 = vpop.f32.mrb[0].mxu0
  %v294 = vadd.f32 %v122, %v293
  %v295 = vpop.f32.mrb[0].mxu0
  %296 = vmatprep.mubr.bf16.mxu0 0
  %297 = vmatmul.mubr.bf16.gmra.mrb[0].mxu0 %v149
  %v298 = vpop.f32.mrb[0].mxu0
  %v299 = vadd.f32 %v122, %v298
  %v300 = vpop.f32.mrb[0].mxu0
  %v301 = vpop.f32.mrb[0].mxu0
  %v302 = vadd.f32 %v122, %v301
  %v303 = vpop.f32.mrb[0].mxu0
  %304 = vmatprep.mubr.bf16.mxu0 0
  %305 = vmatmul.mubr.bf16.gmra.mrb[0].mxu0 %v152
  %v306 = vpop.f32.mrb[0].mxu0
  %v307 = vadd.f32 %v122, %v306
  %v308 = vpop.f32.mrb[0].mxu0
  %v309 = vpop.f32.mrb[0].mxu0
  %v310 = vadd.f32 %v122, %v309
  %v311 = vpop.f32.mrb[0].mxu0
  %312 = vmatprep.mubr.bf16.mxu0 0
  %313 = vmatmul.mubr.bf16.gmra.mrb[0].mxu0 %v155
  %v314 = vpop.f32.mrb[0].mxu0
  %v315 = vadd.f32 %v122, %v314
  %v316 = vpop.f32.mrb[0].mxu0
  %v317 = vpop.f32.mrb[0].mxu0
  %v318 = vadd.f32 %v122, %v317
  %v319 = vpop.f32.mrb[0].mxu0
  %320 = vmatprep.mubr.bf16.mxu0 0
  %321 = vmatmul.mubr.bf16.gmra.mrb[0].mxu0 %v158
  %v322 = vpop.f32.mrb[0].mxu0
  %v323 = vadd.f32 %v122, %v322
  %v324 = vpop.f32.mrb[0].mxu0
  %v325 = vpop.f32.mrb[0].mxu0
  %v326 = vadd.f32 %v122, %v325
  %v327 = vpop.f32.mrb[0].mxu0
  %328 = vmatprep.mubr.bf16.mxu0 0
  %329 = vmatmul.mubr.bf16.gmra.mrb[0].mxu0 %v161
  %v330 = vpop.f32.mrb[0].mxu0
  %v331 = vadd.f32 %v122, %v330
  %v332 = vpop.f32.mrb[0].mxu0
  %v333 = vpop.f32.mrb[0].mxu0
  %v334 = vadd.f32 %v122, %v333
  %v335 = vpop.f32.mrb[0].mxu0
  %336 = vmatprep.mubr.bf16.mxu0 0
  %337 = vmatmul.mubr.bf16.gmra.mrb[0].mxu0 %v164
  %v338 = vpop.f32.mrb[0].mxu0
  %v339 = vadd.f32 %v122, %v338
  %v340 = vpop.f32.mrb[0].mxu0
  %v341 = vpop.f32.mrb[0].mxu0
  %v342 = vadd.f32 %v122, %v341
  %v343 = vpop.f32.mrb[0].mxu0
  %344 = vmatprep.mubr.bf16.mxu0 0
  %345 = vmatmul.mubr.bf16.gmra.mrb[0].mxu0 %v167
  %v346 = vpop.f32.mrb[0].mxu0
  %v347 = vadd.f32 %v122, %v346
  %v348 = vpop.f32.mrb[0].mxu0
  %v349 = vpop.f32.mrb[0].mxu0
  %v350 = vadd.f32 %v122, %v349
  %v351 = vpop.f32.mrb[0].mxu0
  %352 = vmatprep.mubr.bf16.mxu0 0
  %353 = vmatmul.mubr.bf16.gmra.mrb[0].mxu0 %v170
  %v354 = vpop.f32.mrb[0].mxu0
  %v355 = vadd.f32 %v122, %v354
  %v356 = vpop.f32.mrb[0].mxu0
  %v357 = vpop.f32.mrb[0].mxu0
  %v358 = vadd.f32 %v122, %v357
  %v359 = vpop.f32.mrb[0].mxu0
  %360 = vmatprep.mubr.bf16.mxu0 0
  %361 = vmatmul.mubr.bf16.gmra.mrb[0].mxu0 %v173
  %v362 = vpop.f32.mrb[0].mxu0
  %v363 = vadd.f32 %v122, %v362
  %v364 = vpop.f32.mrb[0].mxu0
  %v365 = vpop.f32.mrb[0].mxu0
  %v366 = vadd.f32 %v122, %v365
  %v367 = vpop.f32.mrb[0].mxu0
  %368 = vmatprep.mubr.bf16.mxu0 0
  %369 = vmatmul.mubr.bf16.gmra.mrb[0].mxu0 %v176
  %v370 = vpop.f32.mrb[0].mxu0
  %v371 = vadd.f32 %v122, %v370
  %v372 = vpop.f32.mrb[0].mxu0
  %v373 = vpop.f32.mrb[0].mxu0
  %v374 = vadd.f32 %v122, %v373
  %v375 = vpop.f32.mrb[0].mxu0
  %376 = vmatprep.mubr.bf16.mxu0 0
  %377 = vmatmul.mubr.bf16.gmra.mrb[0].mxu0 %v179
  %v378 = vpop.f32.mrb[0].mxu0
  %v379 = vadd.f32 %v122, %v378
  %v380 = vpop.f32.mrb[0].mxu0
  %v381 = vpop.f32.mrb[0].mxu0
  %v382 = vadd.f32 %v122, %v381
  %v383 = vpop.f32.mrb[0].mxu0
  %384 = vmatprep.mubr.bf16.mxu0 0
  %385 = vmatmul.mubr.bf16.gmra.mrb[0].mxu0 %v182
  %v386 = vpop.f32.mrb[0].mxu0
  %v387 = vadd.f32 %v122, %v386
  %v388 = vpop.f32.mrb[0].mxu0
  %v389 = vpop.f32.mrb[0].mxu0
  %v390 = vadd.f32 %v122, %v389
  %v391 = vpop.f32.mrb[0].mxu0
  %392 = vmatprep.mubr.bf16.mxu0 0
  %393 = vmatmul.mubr.bf16.gmra.mrb[0].mxu0 %v185
  %v394 = vpop.f32.mrb[0].mxu0
  %v395 = vadd.f32 %v122, %v394
  %v396 = vpop.f32.mrb[0].mxu0
  %v397 = vpop.f32.mrb[0].mxu0
  %v398 = vadd.f32 %v122, %v397
  %v399 = vpop.f32.mrb[0].mxu0
  %400 = vmatprep.mubr.bf16.mxu0 0
  %401 = vmatmul.mubr.bf16.gmra.mrb[0].mxu0 %v188
  %v402 = vpop.f32.mrb[0].mxu0
  %v403 = vadd.f32 %v122, %v402
  %v404 = vpop.f32.mrb[0].mxu0
  %v405 = vpop.f32.mrb[0].mxu0
  %v406 = vadd.f32 %v122, %v405
  %v407 = vpop.f32.mrb[0].mxu0
  %408 = vmatprep.mubr.bf16.mxu0 0
  %409 = vmatmul.mubr.bf16.gmra.mrb[0].mxu0 %v191
  %v410 = vpop.f32.mrb[0].mxu0
  %v411 = vadd.f32 %v122, %v410
  %v412 = vpop.f32.mrb[0].mxu0
  %v413 = vpop.f32.mrb[0].mxu0
  %v414 = vadd.f32 %v122, %v413
  %v415 = vpop.f32.mrb[0].mxu0
  %416 = vmatprep.mubr.bf16.mxu0 0
  %417 = vmatmul.mubr.bf16.gmra.mrb[0].mxu0 %v194
  %v418 = vpop.f32.mrb[0].mxu0
  %v419 = vadd.f32 %v122, %v418
  %v420 = vpop.f32.mrb[0].mxu0
  %v421 = vpop.f32.mrb[0].mxu0
  %v422 = vadd.f32 %v122, %v421
  %v423 = vpop.f32.mrb[0].mxu0
  %424 = vmatprep.mubr.bf16.mxu0 0
  %425 = vmatmul.mubr.bf16.gmra.mrb[0].mxu0 %v197
  %v426 = vpop.f32.mrb[0].mxu0
  %v427 = vadd.f32 %v122, %v426
  %v428 = vpop.f32.mrb[0].mxu0
  %v429 = vpop.f32.mrb[0].mxu0
  %v430 = vadd.f32 %v122, %v429
  %v431 = vpop.f32.mrb[0].mxu0
  %432 = vmatprep.mubr.bf16.mxu0 0
  %433 = vmatmul.mubr.bf16.gmra.mrb[0].mxu0 %v200
  %v434 = vpop.f32.mrb[0].mxu0
  %v435 = vadd.f32 %v122, %v434
  %v436 = vpop.f32.mrb[0].mxu0
  %v437 = vpop.f32.mrb[0].mxu0
  %v438 = vadd.f32 %v122, %v437
  %v439 = vpop.f32.mrb[0].mxu0
  %440 = vmatprep.mubr.bf16.mxu0 0
  %441 = vmatmul.mubr.bf16.gmra.mrb[0].mxu0 %v203
  %v442 = vpop.f32.mrb[0].mxu0
  %v443 = vadd.f32 %v122, %v442
  %v444 = vpop.f32.mrb[0].mxu0
  %v445 = vpop.f32.mrb[0].mxu0
  %v446 = vadd.f32 %v122, %v445
  %v447 = vpop.f32.mrb[0].mxu0
  %448 = vmatprep.mubr.bf16.mxu0 0
  %449 = vmatmul.mubr.bf16.gmra.mrb[0].mxu0 %v206
  %v450 = vpop.f32.mrb[0].mxu0
  %v451 = vadd.f32 %v122, %v450
  %v452 = vpop.f32.mrb[0].mxu0
  %v453 = vpop.f32.mrb[0].mxu0
  %v454 = vadd.f32 %v122, %v453
  %v455 = vpop.f32.mrb[0].mxu0
  %456 = vmatprep.mubr.bf16.mxu0 0
  %457 = vmatmul.mubr.bf16.gmra.mrb[0].mxu0 %v209
  %v458 = vpop.f32.mrb[0].mxu0
  %v459 = vadd.f32 %v122, %v458
  %v460 = vpop.f32.mrb[0].mxu0
  %v461 = vpop.f32.mrb[0].mxu0
  %v462 = vadd.f32 %v122, %v461
  %v463 = vpop.f32.mrb[0].mxu0
  %464 = vmatprep.mubr.bf16.mxu0 0
  %465 = vmatmul.mubr.bf16.gmra.mrb[0].mxu0 %v212
  %v466 = vpop.f32.mrb[0].mxu0
  %v467 = vadd.f32 %v122, %v466
  %v468 = vpop.f32.mrb[0].mxu0
  %v469 = vpop.f32.mrb[0].mxu0
  %v470 = vadd.f32 %v122, %v469
  %v471 = vpop.f32.mrb[0].mxu0
  %472 = vmatprep.mubr.bf16.mxu0 0
  %473 = vmatmul.mubr.bf16.gmra.mrb[0].mxu0 %v215
  %v474 = vpop.f32.mrb[0].mxu0
  %v475 = vadd.f32 %v122, %v474
  %v476 = vpop.f32.mrb[0].mxu0
  %v477 = vpop.f32.mrb[0].mxu0
  %v478 = vadd.f32 %v122, %v477
  %v479 = vpop.f32.mrb[0].mxu0
  %480 = vmatprep.mubr.bf16.mxu0 0
  %481 = vmatmul.mubr.bf16.gmra.mrb[0].mxu0 %v218
  %v482 = vpop.f32.mrb[0].mxu0
  %v483 = vadd.f32 %v122, %v482
  %v484 = vpop.f32.mrb[0].mxu0
  %v485 = vpop.f32.mrb[0].mxu0
  %v486 = vadd.f32 %v122, %v485
  %v487 = vpop.f32.mrb[0].mxu0
  %488 = vmatprep.mubr.bf16.mxu0 0
  %489 = vmatmul.mubr.bf16.gmra.mrb[0].mxu0 %v221
  %v490 = vpop.f32.mrb[0].mxu0
  %v491 = vadd.f32 %v122, %v490
  %v492 = vpop.f32.mrb[0].mxu0
  %v493 = vpop.f32.mrb[0].mxu0
  %v494 = vadd.f32 %v122, %v493
  %v495 = vpop.f32.mrb[0].mxu0
  %496 = vmatprep.mubr.bf16.mxu0 0
  %497 = vmatmul.mubr.bf16.gmra.mrb[0].mxu0 %v224
  %v498 = vpop.f32.mrb[0].mxu0
  %v499 = vadd.f32 %v122, %v498
  %v500 = vpop.f32.mrb[0].mxu0
  %v501 = vpop.f32.mrb[0].mxu0
  %v502 = vadd.f32 %v122, %v501
  %v503 = vpop.f32.mrb[0].mxu0
  %504 = vmatprep.mubr.bf16.mxu0 0
  %505 = vmatmul.mubr.bf16.gmra.mrb[0].mxu0 %v227
  %v506 = vpop.f32.mrb[0].mxu0
  %v507 = vadd.f32 %v122, %v506
  %v508 = vpop.f32.mrb[0].mxu0
  %v509 = vpop.f32.mrb[0].mxu0
  %v510 = vadd.f32 %v122, %v509
  %v511 = vpop.f32.mrb[0].mxu0
  %512 = vmatprep.mubr.bf16.mxu0 0
  %513 = vmatmul.mubr.bf16.gmra.mrb[0].mxu0 %v230
  %v514 = vpop.f32.mrb[0].mxu0
  %v515 = vadd.f32 %v122, %v514
  %v516 = vpop.f32.mrb[0].mxu0
  %v517 = vpop.f32.mrb[0].mxu0
  %v518 = vadd.f32 %v122, %v517
  %v519 = vpop.f32.mrb[0].mxu0
  %520 = vdwg.mxu0
  %v521 = vmax.f32 %v267, 0.0
  %v522 = vmax.f32 %v270, 0.0
  %v523 = vmax.f32 %v275, 0.0
  %v524 = vmax.f32 %v278, 0.0
  %v525 = vmax.f32 %v283, 0.0
  %v526 = vmax.f32 %v286, 0.0
  %v527 = vmax.f32 %v291, 0.0
  %v528 = vmax.f32 %v294, 0.0
  %v529 = vmax.f32 %v299, 0.0
  %v530 = vmax.f32 %v302, 0.0
  %v531 = vmax.f32 %v307, 0.0
  %v532 = vmax.f32 %v310, 0.0
  %v533 = vmax.f32 %v315, 0.0
  %v534 = vmax.f32 %v318, 0.0
  %v535 = vmax.f32 %v323, 0.0
  %v536 = vmax.f32 %v326, 0.0
  %v537 = vmax.f32 %v331, 0.0
  %v538 = vmax.f32 %v334, 0.0
  %v539 = vmax.f32 %v339, 0.0
  %v540 = vmax.f32 %v342, 0.0
  %v541 = vmax.f32 %v347, 0.0
  %v542 = vmax.f32 %v350, 0.0
  %v543 = vmax.f32 %v355, 0.0
  %v544 = vmax.f32 %v358, 0.0
  %v545 = vmax.f32 %v363, 0.0
  %v546 = vmax.f32 %v366, 0.0
  %v547 = vmax.f32 %v371, 0.0
  %v548 = vmax.f32 %v374, 0.0
  %v549 = vmax.f32 %v379, 0.0
  %v550 = vmax.f32 %v382, 0.0
  %v551 = vmax.f32 %v387, 0.0
  %v552 = vmax.f32 %v390, 0.0
  %v553 = vmax.f32 %v395, 0.0
  %v554 = vmax.f32 %v398, 0.0
  %v555 = vmax.f32 %v403, 0.0
  %v556 = vmax.f32 %v406, 0.0
  %v557 = vmax.f32 %v411, 0.0
  %v558 = vmax.f32 %v414, 0.0
  %v559 = vmax.f32 %v419, 0.0
  %v560 = vmax.f32 %v422, 0.0
  %v561 = vmax.f32 %v427, 0.0
  %v562 = vmax.f32 %v430, 0.0
  %v563 = vmax.f32 %v435, 0.0
  %v564 = vmax.f32 %v438, 0.0
  %v565 = vmax.f32 %v443, 0.0
  %v566 = vmax.f32 %v446, 0.0
  %v567 = vmax.f32 %v451, 0.0
  %v568 = vmax.f32 %v454, 0.0
  %v569 = vmax.f32 %v459, 0.0
  %v570 = vmax.f32 %v462, 0.0
  %v571 = vmax.f32 %v467, 0.0
  %v572 = vmax.f32 %v470, 0.0
  %v573 = vmax.f32 %v475, 0.0
  %v574 = vmax.f32 %v478, 0.0
  %v575 = vmax.f32 %v483, 0.0
  %v576 = vmax.f32 %v486, 0.0
  %v577 = vmax.f32 %v491, 0.0
  %v578 = vmax.f32 %v494, 0.0
  %v579 = vmax.f32 %v499, 0.0
  %v580 = vmax.f32 %v502, 0.0
  %v581 = vmax.f32 %v507, 0.0
  %v582 = vmax.f32 %v510, 0.0
  %v583 = vmax.f32 %v515, 0.0
  %v584 = vmax.f32 %v518, 0.0
  %v585 = vpack.c.bf16 %v522, %v521
  %v586 = vpack.c.bf16 %v524, %v523
  %v587 = vpack.c.bf16 %v526, %v525
  %v588 = vpack.c.bf16 %v528, %v527
  %v589 = vpack.c.bf16 %v530, %v529
  %v590 = vpack.c.bf16 %v532, %v531
  %v591 = vpack.c.bf16 %v534, %v533
  %v592 = vpack.c.bf16 %v536, %v535
  %v593 = vpack.c.bf16 %v538, %v537
  %v594 = vpack.c.bf16 %v540, %v539
  %v595 = vpack.c.bf16 %v542, %v541
  %v596 = vpack.c.bf16 %v544, %v543
  %v597 = vpack.c.bf16 %v546, %v545
  %v598 = vpack.c.bf16 %v548, %v547
  %v599 = vpack.c.bf16 %v550, %v549
  %v600 = vpack.c.bf16 %v552, %v551
  %v601 = vpack.c.bf16 %v554, %v553
  %v602 = vpack.c.bf16 %v556, %v555
  %v603 = vpack.c.bf16 %v558, %v557
  %v604 = vpack.c.bf16 %v560, %v559
  %v605 = vpack.c.bf16 %v562, %v561
  %v606 = vpack.c.bf16 %v564, %v563
  %v607 = vpack.c.bf16 %v566, %v565
  %v608 = vpack.c.bf16 %v568, %v567
  %v609 = vpack.c.bf16 %v570, %v569
  %v610 = vpack.c.bf16 %v572, %v571
  %v611 = vpack.c.bf16 %v574, %v573
  %v612 = vpack.c.bf16 %v576, %v575
  %v613 = vpack.c.bf16 %v578, %v577
  %v614 = vpack.c.bf16 %v580, %v579
  %v615 = vpack.c.bf16 %v582, %v581
  %v616 = vpack.c.bf16 %v584, %v583
  %v617 = vld [vmem:[%s2] sm:$0xf]
  %v618 = vld [vmem:[%s2 + $0x4] sm:$0xf]
  %v619 = vld [vmem:[%s2 + $0x8] sm:$0xf]
  %v620 = vld [vmem:[%s2 + $0xc] sm:$0xf]
  %v621 = vld [vmem:[%s2 + $0x10] sm:$0xf]
  %v622 = vld [vmem:[%s2 + $0x14] sm:$0xf]
  %v623 = vld [vmem:[%s2 + $0x18] sm:$0xf]
  %v624 = vld [vmem:[%s2 + $0x1c] sm:$0xf]
  %v625 = vld [vmem:[%s2 + $0x20] sm:$0xf]
  %v626 = vld [vmem:[%s2 + $0x24] sm:$0xf]
  %v627 = vld [vmem:[%s2 + $0x28] sm:$0xf]
  %v628 = vld [vmem:[%s2 + $0x2c] sm:$0xf]
  %v629 = vld [vmem:[%s2 + $0x30] sm:$0xf]
  %v630 = vld [vmem:[%s2 + $0x34] sm:$0xf]
  %v631 = vld [vmem:[%s2 + $0x38] sm:$0xf]
  %v632 = vld [vmem:[%s2 + $0x3c] sm:$0xf]
  %v633 = vlaneseq
  %v634 = vshrl.u32 %v633, 7
  %v635 = vsub.s32 1, %v634
  %v636 = vrot.slane %v18, %v635
  %v653 = vunpack.c.l.b16 %v617
  %v654 = vunpack.c.l.b16 %v618
  %v655 = vunpack.c.l.b16 %v619
  %v656 = vunpack.c.l.b16 %v620
  %v657 = vunpack.c.l.b16 %v621
  %v658 = vunpack.c.l.b16 %v622
  %v659 = vunpack.c.l.b16 %v623
  %v660 = vunpack.c.l.b16 %v624
  %v661 = vunpack.c.l.b16 %v625
  %v662 = vunpack.c.l.b16 %v626
  %v663 = vunpack.c.l.b16 %v627
  %v664 = vunpack.c.l.b16 %v628
  %v665 = vunpack.c.l.b16 %v629
  %v666 = vunpack.c.l.b16 %v630
  %v667 = vunpack.c.l.b16 %v631
  %v668 = vunpack.c.l.b16 %v632
  %v669 = vpack.c.b16 %v654, %v653
  %v670 = vpack.c.b16 %v656, %v655
  %v671 = vpack.c.b16 %v658, %v657
  %v672 = vpack.c.b16 %v660, %v659
  %v673 = vpack.c.b16 %v662, %v661
  %v674 = vpack.c.b16 %v664, %v663
  %v675 = vpack.c.b16 %v666, %v665
  %v676 = vpack.c.b16 %v668, %v667
  %685 = vmatprep.subr.bf16.mxu0 0
  %686 = vmatpush1.bf16.msra.mxu0 %v669
  %687 = vmatprep.subr.bf16.mxu0 0
  %688 = vmatpush1.bf16.msra.mxu0 %v670
  %689 = vmatprep.subr.bf16.mxu0 0
  %690 = vmatpush1.bf16.msra.mxu0 %v671
  %691 = vmatprep.subr.bf16.mxu0 0
  %692 = vmatpush1.bf16.msra.mxu0 %v672
  %693 = vmatprep.subr.bf16.mxu0 0
  %694 = vmatpush1.bf16.msra.mxu0 %v673
  %695 = vmatprep.subr.bf16.mxu0 0
  %696 = vmatpush1.bf16.msra.mxu0 %v674
  %697 = vmatprep.subr.bf16.mxu0 0
  %698 = vmatpush1.bf16.msra.mxu0 %v675
  %699 = vmatprep.subr.bf16.mxu0 0
  %700 = vmatpush1.bf16.msra.mxu0 %v676
  %701 = vmatprep.subr.bf16.mxu0 0
  %702 = vmatpush1.bf16.msra.mxu0 0
  %703 = vmatprep.subr.bf16.mxu0 0
  %704 = vmatpush1.bf16.msra.mxu0 0
  %705 = vmatprep.subr.bf16.mxu0 0
  %706 = vmatpush1.bf16.msra.mxu0 0
  %707 = vmatprep.subr.bf16.mxu0 0
  %708 = vmatpush1.bf16.msra.mxu0 0
  %709 = vmatprep.subr.bf16.mxu0 0
  %710 = vmatpush1.bf16.msra.mxu0 0
  %711 = vmatprep.subr.bf16.mxu0 0
  %712 = vmatpush1.bf16.msra.mxu0 0
  %713 = vmatprep.subr.bf16.mxu0 0
  %714 = vmatpush1.bf16.msra.mxu0 0
  %715 = vmatprep.subr.bf16.mxu0 0
  %716 = vmatpush1.bf16.msra.mxu0 0
  %717 = vmatprep.mubr.bf16.mxu0 0
  %718 = vmatmul.mubr.bf16.gmra.mrb[0].mxu0 %v585
  %v719 = vpop.f32.mrb[0].mxu0
  %v720 = vadd.f32 %v636, %v719
  %v721 = vpop.f32.mrb[0].mxu0
  %v722 = vpop.f32.mrb[0].mxu0
  %v723 = vadd.f32 %v636, %v722
  %v724 = vpop.f32.mrb[0].mxu0
  %725 = vmatprep.mubr.bf16.mxu0 0
  %726 = vmatmul.mubr.bf16.gmra.mrb[0].mxu0 %v586
  %v727 = vpop.f32.mrb[0].mxu0
  %v728 = vadd.f32 %v636, %v727
  %v729 = vpop.f32.mrb[0].mxu0
  %v730 = vpop.f32.mrb[0].mxu0
  %v731 = vadd.f32 %v636, %v730
  %v732 = vpop.f32.mrb[0].mxu0
  %733 = vmatprep.mubr.bf16.mxu0 0
  %734 = vmatmul.mubr.bf16.gmra.mrb[0].mxu0 %v587
  %v735 = vpop.f32.mrb[0].mxu0
  %v736 = vadd.f32 %v636, %v735
  %v737 = vpop.f32.mrb[0].mxu0
  %v738 = vpop.f32.mrb[0].mxu0
  %v739 = vadd.f32 %v636, %v738
  %v740 = vpop.f32.mrb[0].mxu0
  %741 = vmatprep.mubr.bf16.mxu0 0
  %742 = vmatmul.mubr.bf16.gmra.mrb[0].mxu0 %v588
  %v743 = vpop.f32.mrb[0].mxu0
  %v744 = vadd.f32 %v636, %v743
  %v745 = vpop.f32.mrb[0].mxu0
  %v746 = vpop.f32.mrb[0].mxu0
  %v747 = vadd.f32 %v636, %v746
  %v748 = vpop.f32.mrb[0].mxu0
  %749 = vmatprep.mubr.bf16.mxu0 0
  %750 = vmatmul.mubr.bf16.gmra.mrb[0].mxu0 %v589
  %v751 = vpop.f32.mrb[0].mxu0
  %v752 = vadd.f32 %v636, %v751
  %v753 = vpop.f32.mrb[0].mxu0
  %v754 = vpop.f32.mrb[0].mxu0
  %v755 = vadd.f32 %v636, %v754
  %v756 = vpop.f32.mrb[0].mxu0
  %757 = vmatprep.mubr.bf16.mxu0 0
  %758 = vmatmul.mubr.bf16.gmra.mrb[0].mxu0 %v590
  %v759 = vpop.f32.mrb[0].mxu0
  %v760 = vadd.f32 %v636, %v759
  %v761 = vpop.f32.mrb[0].mxu0
  %v762 = vpop.f32.mrb[0].mxu0
  %v763 = vadd.f32 %v636, %v762
  %v764 = vpop.f32.mrb[0].mxu0
  %765 = vmatprep.mubr.bf16.mxu0 0
  %766 = vmatmul.mubr.bf16.gmra.mrb[0].mxu0 %v591
  %v767 = vpop.f32.mrb[0].mxu0
  %v768 = vadd.f32 %v636, %v767
  %v769 = vpop.f32.mrb[0].mxu0
  %v770 = vpop.f32.mrb[0].mxu0
  %v771 = vadd.f32 %v636, %v770
  %v772 = vpop.f32.mrb[0].mxu0
  %773 = vmatprep.mubr.bf16.mxu0 0
  %774 = vmatmul.mubr.bf16.gmra.mrb[0].mxu0 %v592
  %v775 = vpop.f32.mrb[0].mxu0
  %v776 = vadd.f32 %v636, %v775
  %v777 = vpop.f32.mrb[0].mxu0
  %v778 = vpop.f32.mrb[0].mxu0
  %v779 = vadd.f32 %v636, %v778
  %v780 = vpop.f32.mrb[0].mxu0
  %781 = vmatprep.mubr.bf16.mxu0 0
  %782 = vmatmul.mubr.bf16.gmra.mrb[0].mxu0 %v593
  %v783 = vpop.f32.mrb[0].mxu0
  %v784 = vadd.f32 %v636, %v783
  %v785 = vpop.f32.mrb[0].mxu0
  %v786 = vpop.f32.mrb[0].mxu0
  %v787 = vadd.f32 %v636, %v786
  %v788 = vpop.f32.mrb[0].mxu0
  %789 = vmatprep.mubr.bf16.mxu0 0
  %790 = vmatmul.mubr.bf16.gmra.mrb[0].mxu0 %v594
  %v791 = vpop.f32.mrb[0].mxu0
  %v792 = vadd.f32 %v636, %v791
  %v793 = vpop.f32.mrb[0].mxu0
  %v794 = vpop.f32.mrb[0].mxu0
  %v795 = vadd.f32 %v636, %v794
  %v796 = vpop.f32.mrb[0].mxu0
  %797 = vmatprep.mubr.bf16.mxu0 0
  %798 = vmatmul.mubr.bf16.gmra.mrb[0].mxu0 %v595
  %v799 = vpop.f32.mrb[0].mxu0
  %v800 = vadd.f32 %v636, %v799
  %v801 = vpop.f32.mrb[0].mxu0
  %v802 = vpop.f32.mrb[0].mxu0
  %v803 = vadd.f32 %v636, %v802
  %v804 = vpop.f32.mrb[0].mxu0
  %805 = vmatprep.mubr.bf16.mxu0 0
  %806 = vmatmul.mubr.bf16.gmra.mrb[0].mxu0 %v596
  %v807 = vpop.f32.mrb[0].mxu0
  %v808 = vadd.f32 %v636, %v807
  %v809 = vpop.f32.mrb[0].mxu0
  %v810 = vpop.f32.mrb[0].mxu0
  %v811 = vadd.f32 %v636, %v810
  %v812 = vpop.f32.mrb[0].mxu0
  %813 = vmatprep.mubr.bf16.mxu0 0
  %814 = vmatmul.mubr.bf16.gmra.mrb[0].mxu0 %v597
  %v815 = vpop.f32.mrb[0].mxu0
  %v816 = vadd.f32 %v636, %v815
  %v817 = vpop.f32.mrb[0].mxu0
  %v818 = vpop.f32.mrb[0].mxu0
  %v819 = vadd.f32 %v636, %v818
  %v820 = vpop.f32.mrb[0].mxu0
  %821 = vmatprep.mubr.bf16.mxu0 0
  %822 = vmatmul.mubr.bf16.gmra.mrb[0].mxu0 %v598
  %v823 = vpop.f32.mrb[0].mxu0
  %v824 = vadd.f32 %v636, %v823
  %v825 = vpop.f32.mrb[0].mxu0
  %v826 = vpop.f32.mrb[0].mxu0
  %v827 = vadd.f32 %v636, %v826
  %v828 = vpop.f32.mrb[0].mxu0
  %829 = vmatprep.mubr.bf16.mxu0 0
  %830 = vmatmul.mubr.bf16.gmra.mrb[0].mxu0 %v599
  %v831 = vpop.f32.mrb[0].mxu0
  %v832 = vadd.f32 %v636, %v831
  %v833 = vpop.f32.mrb[0].mxu0
  %v834 = vpop.f32.mrb[0].mxu0
  %v835 = vadd.f32 %v636, %v834
  %v836 = vpop.f32.mrb[0].mxu0
  %837 = vmatprep.mubr.bf16.mxu0 0
  %838 = vmatmul.mubr.bf16.gmra.mrb[0].mxu0 %v600
  %v839 = vpop.f32.mrb[0].mxu0
  %v840 = vadd.f32 %v636, %v839
  %v841 = vpop.f32.mrb[0].mxu0
  %v842 = vpop.f32.mrb[0].mxu0
  %v843 = vadd.f32 %v636, %v842
  %v844 = vpop.f32.mrb[0].mxu0
  %845 = vmatprep.mubr.bf16.mxu0 0
  %846 = vmatmul.mubr.bf16.gmra.mrb[0].mxu0 %v601
  %v847 = vpop.f32.mrb[0].mxu0
  %v848 = vadd.f32 %v636, %v847
  %v849 = vpop.f32.mrb[0].mxu0
  %v850 = vpop.f32.mrb[0].mxu0
  %v851 = vadd.f32 %v636, %v850
  %v852 = vpop.f32.mrb[0].mxu0
  %853 = vmatprep.mubr.bf16.mxu0 0
  %854 = vmatmul.mubr.bf16.gmra.mrb[0].mxu0 %v602
  %v855 = vpop.f32.mrb[0].mxu0
  %v856 = vadd.f32 %v636, %v855
  %v857 = vpop.f32.mrb[0].mxu0
  %v858 = vpop.f32.mrb[0].mxu0
  %v859 = vadd.f32 %v636, %v858
  %v860 = vpop.f32.mrb[0].mxu0
  %861 = vmatprep.mubr.bf16.mxu0 0
  %862 = vmatmul.mubr.bf16.gmra.mrb[0].mxu0 %v603
  %v863 = vpop.f32.mrb[0].mxu0
  %v864 = vadd.f32 %v636, %v863
  %v865 = vpop.f32.mrb[0].mxu0
  %v866 = vpop.f32.mrb[0].mxu0
  %v867 = vadd.f32 %v636, %v866
  %v868 = vpop.f32.mrb[0].mxu0
  %869 = vmatprep.mubr.bf16.mxu0 0
  %870 = vmatmul.mubr.bf16.gmra.mrb[0].mxu0 %v604
  %v871 = vpop.f32.mrb[0].mxu0
  %v872 = vadd.f32 %v636, %v871
  %v873 = vpop.f32.mrb[0].mxu0
  %v874 = vpop.f32.mrb[0].mxu0
  %v875 = vadd.f32 %v636, %v874
  %v876 = vpop.f32.mrb[0].mxu0
  %877 = vmatprep.mubr.bf16.mxu0 0
  %878 = vmatmul.mubr.bf16.gmra.mrb[0].mxu0 %v605
  %v879 = vpop.f32.mrb[0].mxu0
  %v880 = vadd.f32 %v636, %v879
  %v881 = vpop.f32.mrb[0].mxu0
  %v882 = vpop.f32.mrb[0].mxu0
  %v883 = vadd.f32 %v636, %v882
  %v884 = vpop.f32.mrb[0].mxu0
  %885 = vmatprep.mubr.bf16.mxu0 0
  %886 = vmatmul.mubr.bf16.gmra.mrb[0].mxu0 %v606
  %v887 = vpop.f32.mrb[0].mxu0
  %v888 = vadd.f32 %v636, %v887
  %v889 = vpop.f32.mrb[0].mxu0
  %v890 = vpop.f32.mrb[0].mxu0
  %v891 = vadd.f32 %v636, %v890
  %v892 = vpop.f32.mrb[0].mxu0
  %893 = vmatprep.mubr.bf16.mxu0 0
  %894 = vmatmul.mubr.bf16.gmra.mrb[0].mxu0 %v607
  %v895 = vpop.f32.mrb[0].mxu0
  %v896 = vadd.f32 %v636, %v895
  %v897 = vpop.f32.mrb[0].mxu0
  %v898 = vpop.f32.mrb[0].mxu0
  %v899 = vadd.f32 %v636, %v898
  %v900 = vpop.f32.mrb[0].mxu0
  %901 = vmatprep.mubr.bf16.mxu0 0
  %902 = vmatmul.mubr.bf16.gmra.mrb[0].mxu0 %v608
  %v903 = vpop.f32.mrb[0].mxu0
  %v904 = vadd.f32 %v636, %v903
  %v905 = vpop.f32.mrb[0].mxu0
  %v906 = vpop.f32.mrb[0].mxu0
  %v907 = vadd.f32 %v636, %v906
  %v908 = vpop.f32.mrb[0].mxu0
  %909 = vmatprep.mubr.bf16.mxu0 0
  %910 = vmatmul.mubr.bf16.gmra.mrb[0].mxu0 %v609
  %v911 = vpop.f32.mrb[0].mxu0
  %v912 = vadd.f32 %v636, %v911
  %v913 = vpop.f32.mrb[0].mxu0
  %v914 = vpop.f32.mrb[0].mxu0
  %v915 = vadd.f32 %v636, %v914
  %v916 = vpop.f32.mrb[0].mxu0
  %917 = vmatprep.mubr.bf16.mxu0 0
  %918 = vmatmul.mubr.bf16.gmra.mrb[0].mxu0 %v610
  %v919 = vpop.f32.mrb[0].mxu0
  %v920 = vadd.f32 %v636, %v919
  %v921 = vpop.f32.mrb[0].mxu0
  %v922 = vpop.f32.mrb[0].mxu0
  %v923 = vadd.f32 %v636, %v922
  %v924 = vpop.f32.mrb[0].mxu0
  %925 = vmatprep.mubr.bf16.mxu0 0
  %926 = vmatmul.mubr.bf16.gmra.mrb[0].mxu0 %v611
  %v927 = vpop.f32.mrb[0].mxu0
  %v928 = vadd.f32 %v636, %v927
  %v929 = vpop.f32.mrb[0].mxu0
  %v930 = vpop.f32.mrb[0].mxu0
  %v931 = vadd.f32 %v636, %v930
  %v932 = vpop.f32.mrb[0].mxu0
  %933 = vmatprep.mubr.bf16.mxu0 0
  %934 = vmatmul.mubr.bf16.gmra.mrb[0].mxu0 %v612
  %v935 = vpop.f32.mrb[0].mxu0
  %v936 = vadd.f32 %v636, %v935
  %v937 = vpop.f32.mrb[0].mxu0
  %v938 = vpop.f32.mrb[0].mxu0
  %v939 = vadd.f32 %v636, %v938
  %v940 = vpop.f32.mrb[0].mxu0
  %941 = vmatprep.mubr.bf16.mxu0 0
  %942 = vmatmul.mubr.bf16.gmra.mrb[0].mxu0 %v613
  %v943 = vpop.f32.mrb[0].mxu0
  %v944 = vadd.f32 %v636, %v943
  %v945 = vpop.f32.mrb[0].mxu0
  %v946 = vpop.f32.mrb[0].mxu0
  %v947 = vadd.f32 %v636, %v946
  %v948 = vpop.f32.mrb[0].mxu0
  %949 = vmatprep.mubr.bf16.mxu0 0
  %950 = vmatmul.mubr.bf16.gmra.mrb[0].mxu0 %v614
  %v951 = vpop.f32.mrb[0].mxu0
  %v952 = vadd.f32 %v636, %v951
  %v953 = vpop.f32.mrb[0].mxu0
  %v954 = vpop.f32.mrb[0].mxu0
  %v955 = vadd.f32 %v636, %v954
  %v956 = vpop.f32.mrb[0].mxu0
  %957 = vmatprep.mubr.bf16.mxu0 0
  %958 = vmatmul.mubr.bf16.gmra.mrb[0].mxu0 %v615
  %v959 = vpop.f32.mrb[0].mxu0
  %v960 = vadd.f32 %v636, %v959
  %v961 = vpop.f32.mrb[0].mxu0
  %v962 = vpop.f32.mrb[0].mxu0
  %v963 = vadd.f32 %v636, %v962
  %v964 = vpop.f32.mrb[0].mxu0
  %965 = vmatprep.mubr.bf16.mxu0 0
  %966 = vmatmul.mubr.bf16.gmra.mrb[0].mxu0 %v616
  %v967 = vpop.f32.mrb[0].mxu0
  %v968 = vadd.f32 %v636, %v967
  %v969 = vpop.f32.mrb[0].mxu0
  %v970 = vpop.f32.mrb[0].mxu0
  %v971 = vadd.f32 %v636, %v970
  %v972 = vpop.f32.mrb[0].mxu0
  %973 = vdwg.mxu0
  %v974 = vmax.f32 %v720, 0.0
  %v975 = vmax.f32 %v723, 0.0
  %v976 = vmax.f32 %v728, 0.0
  %v977 = vmax.f32 %v731, 0.0
  %v978 = vmax.f32 %v736, 0.0
  %v979 = vmax.f32 %v739, 0.0
  %v980 = vmax.f32 %v744, 0.0
  %v981 = vmax.f32 %v747, 0.0
  %v982 = vmax.f32 %v752, 0.0
  %v983 = vmax.f32 %v755, 0.0
  %v984 = vmax.f32 %v760, 0.0
  %v985 = vmax.f32 %v763, 0.0
  %v986 = vmax.f32 %v768, 0.0
  %v987 = vmax.f32 %v771, 0.0
  %v988 = vmax.f32 %v776, 0.0
  %v989 = vmax.f32 %v779, 0.0
  %v990 = vmax.f32 %v784, 0.0
  %v991 = vmax.f32 %v787, 0.0
  %v992 = vmax.f32 %v792, 0.0
  %v993 = vmax.f32 %v795, 0.0
  %v994 = vmax.f32 %v800, 0.0
  %v995 = vmax.f32 %v803, 0.0
  %v996 = vmax.f32 %v808, 0.0
  %v997 = vmax.f32 %v811, 0.0
  %v998 = vmax.f32 %v816, 0.0
  %v999 = vmax.f32 %v819, 0.0
  %v1000 = vmax.f32 %v824, 0.0
  %v1001 = vmax.f32 %v827, 0.0
  %v1002 = vmax.f32 %v832, 0.0
  %v1003 = vmax.f32 %v835, 0.0
  %v1004 = vmax.f32 %v840, 0.0
  %v1005 = vmax.f32 %v843, 0.0
  %v1006 = vmax.f32 %v848, 0.0
  %v1007 = vmax.f32 %v851, 0.0
  %v1008 = vmax.f32 %v856, 0.0
  %v1009 = vmax.f32 %v859, 0.0
  %v1010 = vmax.f32 %v864, 0.0
  %v1011 = vmax.f32 %v867, 0.0
  %v1012 = vmax.f32 %v872, 0.0
  %v1013 = vmax.f32 %v875, 0.0
  %v1014 = vmax.f32 %v880, 0.0
  %v1015 = vmax.f32 %v883, 0.0
  %v1016 = vmax.f32 %v888, 0.0
  %v1017 = vmax.f32 %v891, 0.0
  %v1018 = vmax.f32 %v896, 0.0
  %v1019 = vmax.f32 %v899, 0.0
  %v1020 = vmax.f32 %v904, 0.0
  %v1021 = vmax.f32 %v907, 0.0
  %v1022 = vmax.f32 %v912, 0.0
  %v1023 = vmax.f32 %v915, 0.0
  %v1024 = vmax.f32 %v920, 0.0
  %v1025 = vmax.f32 %v923, 0.0
  %v1026 = vmax.f32 %v928, 0.0
  %v1027 = vmax.f32 %v931, 0.0
  %v1028 = vmax.f32 %v936, 0.0
  %v1029 = vmax.f32 %v939, 0.0
  %v1030 = vmax.f32 %v944, 0.0
  %v1031 = vmax.f32 %v947, 0.0
  %v1032 = vmax.f32 %v952, 0.0
  %v1033 = vmax.f32 %v955, 0.0
  %v1034 = vmax.f32 %v960, 0.0
  %v1035 = vmax.f32 %v963, 0.0
  %v1036 = vmax.f32 %v968, 0.0
  %v1037 = vmax.f32 %v971, 0.0
  %v1038 = vpack.c.bf16 %v975, %v974
  %v1039 = vpack.c.bf16 %v977, %v976
  %v1040 = vpack.c.bf16 %v979, %v978
  %v1041 = vpack.c.bf16 %v981, %v980
  %v1042 = vpack.c.bf16 %v983, %v982
  %v1043 = vpack.c.bf16 %v985, %v984
  %v1044 = vpack.c.bf16 %v987, %v986
  %v1045 = vpack.c.bf16 %v989, %v988
  %v1046 = vpack.c.bf16 %v991, %v990
  %v1047 = vpack.c.bf16 %v993, %v992
  %v1048 = vpack.c.bf16 %v995, %v994
  %v1049 = vpack.c.bf16 %v997, %v996
  %v1050 = vpack.c.bf16 %v999, %v998
  %v1051 = vpack.c.bf16 %v1001, %v1000
  %v1052 = vpack.c.bf16 %v1003, %v1002
  %v1053 = vpack.c.bf16 %v1005, %v1004
  %v1054 = vpack.c.bf16 %v1007, %v1006
  %v1055 = vpack.c.bf16 %v1009, %v1008
  %v1056 = vpack.c.bf16 %v1011, %v1010
  %v1057 = vpack.c.bf16 %v1013, %v1012
  %v1058 = vpack.c.bf16 %v1015, %v1014
  %v1059 = vpack.c.bf16 %v1017, %v1016
  %v1060 = vpack.c.bf16 %v1019, %v1018
  %v1061 = vpack.c.bf16 %v1021, %v1020
  %v1062 = vpack.c.bf16 %v1023, %v1022
  %v1063 = vpack.c.bf16 %v1025, %v1024
  %v1064 = vpack.c.bf16 %v1027, %v1026
  %v1065 = vpack.c.bf16 %v1029, %v1028
  %v1066 = vpack.c.bf16 %v1031, %v1030
  %v1067 = vpack.c.bf16 %v1033, %v1032
  %v1068 = vpack.c.bf16 %v1035, %v1034
  %v1069 = vpack.c.bf16 %v1037, %v1036
  %s1070 = scalar_lea.vmem %s2, 64
  %v1071 = vld [vmem:[%s1070] sm:$0xf]
  %v1072 = vld [vmem:[%s1070 + $0x4] sm:$0xf]
  %v1073 = vld [vmem:[%s1070 + $0x8] sm:$0xf]
  %v1074 = vld [vmem:[%s1070 + $0xc] sm:$0xf]
  %v1075 = vld [vmem:[%s1070 + $0x10] sm:$0xf]
  %v1076 = vld [vmem:[%s1070 + $0x14] sm:$0xf]
  %v1077 = vld [vmem:[%s1070 + $0x18] sm:$0xf]
  %v1078 = vld [vmem:[%s1070 + $0x1c] sm:$0xf]
  %v1079 = vld [vmem:[%s1070 + $0x20] sm:$0xf]
  %v1080 = vld [vmem:[%s1070 + $0x24] sm:$0xf]
  %v1081 = vld [vmem:[%s1070 + $0x28] sm:$0xf]
  %v1082 = vld [vmem:[%s1070 + $0x2c] sm:$0xf]
  %v1083 = vld [vmem:[%s1070 + $0x30] sm:$0xf]
  %v1084 = vld [vmem:[%s1070 + $0x34] sm:$0xf]
  %v1085 = vld [vmem:[%s1070 + $0x38] sm:$0xf]
  %v1086 = vld [vmem:[%s1070 + $0x3c] sm:$0xf]
  %v1087 = vlaneseq
  %v1088 = vshrl.u32 %v1087, 7
  %v1089 = vsub.s32 2, %v1088
  %v1090 = vrot.slane %v18, %v1089
  %v1107 = vunpack.c.l.b16 %v1071
  %v1108 = vunpack.c.l.b16 %v1072
  %v1109 = vunpack.c.l.b16 %v1073
  %v1110 = vunpack.c.l.b16 %v1074
  %v1111 = vunpack.c.l.b16 %v1075
  %v1112 = vunpack.c.l.b16 %v1076
  %v1113 = vunpack.c.l.b16 %v1077
  %v1114 = vunpack.c.l.b16 %v1078
  %v1115 = vunpack.c.l.b16 %v1079
  %v1116 = vunpack.c.l.b16 %v1080
  %v1117 = vunpack.c.l.b16 %v1081
  %v1118 = vunpack.c.l.b16 %v1082
  %v1119 = vunpack.c.l.b16 %v1083
  %v1120 = vunpack.c.l.b16 %v1084
  %v1121 = vunpack.c.l.b16 %v1085
  %v1122 = vunpack.c.l.b16 %v1086
  %v1123 = vpack.c.b16 %v1108, %v1107
  %v1124 = vpack.c.b16 %v1110, %v1109
  %v1125 = vpack.c.b16 %v1112, %v1111
  %v1126 = vpack.c.b16 %v1114, %v1113
  %v1127 = vpack.c.b16 %v1116, %v1115
  %v1128 = vpack.c.b16 %v1118, %v1117
  %v1129 = vpack.c.b16 %v1120, %v1119
  %v1130 = vpack.c.b16 %v1122, %v1121
  %1139 = vmatprep.subr.bf16.mxu0 0
  %1140 = vmatpush1.bf16.msra.mxu0 %v1123
  %1141 = vmatprep.subr.bf16.mxu0 0
  %1142 = vmatpush1.bf16.msra.mxu0 %v1124
  %1143 = vmatprep.subr.bf16.mxu0 0
  %1144 = vmatpush1.bf16.msra.mxu0 %v1125
  %1145 = vmatprep.subr.bf16.mxu0 0
  %1146 = vmatpush1.bf16.msra.mxu0 %v1126
  %1147 = vmatprep.subr.bf16.mxu0 0
  %1148 = vmatpush1.bf16.msra.mxu0 %v1127
  %1149 = vmatprep.subr.bf16.mxu0 0
  %1150 = vmatpush1.bf16.msra.mxu0 %v1128
  %1151 = vmatprep.subr.bf16.mxu0 0
  %1152 = vmatpush1.bf16.msra.mxu0 %v1129
  %1153 = vmatprep.subr.bf16.mxu0 0
  %1154 = vmatpush1.bf16.msra.mxu0 %v1130
  %1155 = vmatprep.subr.bf16.mxu0 0
  %1156 = vmatpush1.bf16.msra.mxu0 0
  %1157 = vmatprep.subr.bf16.mxu0 0
  %1158 = vmatpush1.bf16.msra.mxu0 0
  %1159 = vmatprep.subr.bf16.mxu0 0
  %1160 = vmatpush1.bf16.msra.mxu0 0
  %1161 = vmatprep.subr.bf16.mxu0 0
  %1162 = vmatpush1.bf16.msra.mxu0 0
  %1163 = vmatprep.subr.bf16.mxu0 0
  %1164 = vmatpush1.bf16.msra.mxu0 0
  %1165 = vmatprep.subr.bf16.mxu0 0
  %1166 = vmatpush1.bf16.msra.mxu0 0
  %1167 = vmatprep.subr.bf16.mxu0 0
  %1168 = vmatpush1.bf16.msra.mxu0 0
  %1169 = vmatprep.subr.bf16.mxu0 0
  %1170 = vmatpush1.bf16.msra.mxu0 0
  %1171 = vmatprep.mubr.bf16.mxu0 0
  %1172 = vmatmul.mubr.bf16.gmra.mrb[0].mxu0 %v1038
  %v1173 = vpop.f32.mrb[0].mxu0
  %v1174 = vadd.f32 %v1090, %v1173
  %v1175 = vpop.f32.mrb[0].mxu0
  %v1176 = vpop.f32.mrb[0].mxu0
  %v1177 = vadd.f32 %v1090, %v1176
  %v1178 = vpop.f32.mrb[0].mxu0
  %1179 = vmatprep.mubr.bf16.mxu0 0
  %1180 = vmatmul.mubr.bf16.gmra.mrb[0].mxu0 %v1039
  %v1181 = vpop.f32.mrb[0].mxu0
  %v1182 = vadd.f32 %v1090, %v1181
  %v1183 = vpop.f32.mrb[0].mxu0
  %v1184 = vpop.f32.mrb[0].mxu0
  %v1185 = vadd.f32 %v1090, %v1184
  %v1186 = vpop.f32.mrb[0].mxu0
  %1187 = vmatprep.mubr.bf16.mxu0 0
  %1188 = vmatmul.mubr.bf16.gmra.mrb[0].mxu0 %v1040
  %v1189 = vpop.f32.mrb[0].mxu0
  %v1190 = vadd.f32 %v1090, %v1189
  %v1191 = vpop.f32.mrb[0].mxu0
  %v1192 = vpop.f32.mrb[0].mxu0
  %v1193 = vadd.f32 %v1090, %v1192
  %v1194 = vpop.f32.mrb[0].mxu0
  %1195 = vmatprep.mubr.bf16.mxu0 0
  %1196 = vmatmul.mubr.bf16.gmra.mrb[0].mxu0 %v1041
  %v1197 = vpop.f32.mrb[0].mxu0
  %v1198 = vadd.f32 %v1090, %v1197
  %v1199 = vpop.f32.mrb[0].mxu0
  %v1200 = vpop.f32.mrb[0].mxu0
  %v1201 = vadd.f32 %v1090, %v1200
  %v1202 = vpop.f32.mrb[0].mxu0
  %1203 = vmatprep.mubr.bf16.mxu0 0
  %1204 = vmatmul.mubr.bf16.gmra.mrb[0].mxu0 %v1042
  %v1205 = vpop.f32.mrb[0].mxu0
  %v1206 = vadd.f32 %v1090, %v1205
  %v1207 = vpop.f32.mrb[0].mxu0
  %v1208 = vpop.f32.mrb[0].mxu0
  %v1209 = vadd.f32 %v1090, %v1208
  %v1210 = vpop.f32.mrb[0].mxu0
  %1211 = vmatprep.mubr.bf16.mxu0 0
  %1212 = vmatmul.mubr.bf16.gmra.mrb[0].mxu0 %v1043
  %v1213 = vpop.f32.mrb[0].mxu0
  %v1214 = vadd.f32 %v1090, %v1213
  %v1215 = vpop.f32.mrb[0].mxu0
  %v1216 = vpop.f32.mrb[0].mxu0
  %v1217 = vadd.f32 %v1090, %v1216
  %v1218 = vpop.f32.mrb[0].mxu0
  %1219 = vmatprep.mubr.bf16.mxu0 0
  %1220 = vmatmul.mubr.bf16.gmra.mrb[0].mxu0 %v1044
  %v1221 = vpop.f32.mrb[0].mxu0
  %v1222 = vadd.f32 %v1090, %v1221
  %v1223 = vpop.f32.mrb[0].mxu0
  %v1224 = vpop.f32.mrb[0].mxu0
  %v1225 = vadd.f32 %v1090, %v1224
  %v1226 = vpop.f32.mrb[0].mxu0
  %1227 = vmatprep.mubr.bf16.mxu0 0
  %1228 = vmatmul.mubr.bf16.gmra.mrb[0].mxu0 %v1045
  %v1229 = vpop.f32.mrb[0].mxu0
  %v1230 = vadd.f32 %v1090, %v1229
  %v1231 = vpop.f32.mrb[0].mxu0
  %v1232 = vpop.f32.mrb[0].mxu0
  %v1233 = vadd.f32 %v1090, %v1232
  %v1234 = vpop.f32.mrb[0].mxu0
  %1235 = vmatprep.mubr.bf16.mxu0 0
  %1236 = vmatmul.mubr.bf16.gmra.mrb[0].mxu0 %v1046
  %v1237 = vpop.f32.mrb[0].mxu0
  %v1238 = vadd.f32 %v1090, %v1237
  %v1239 = vpop.f32.mrb[0].mxu0
  %v1240 = vpop.f32.mrb[0].mxu0
  %v1241 = vadd.f32 %v1090, %v1240
  %v1242 = vpop.f32.mrb[0].mxu0
  %1243 = vmatprep.mubr.bf16.mxu0 0
  %1244 = vmatmul.mubr.bf16.gmra.mrb[0].mxu0 %v1047
  %v1245 = vpop.f32.mrb[0].mxu0
  %v1246 = vadd.f32 %v1090, %v1245
  %v1247 = vpop.f32.mrb[0].mxu0
  %v1248 = vpop.f32.mrb[0].mxu0
  %v1249 = vadd.f32 %v1090, %v1248
  %v1250 = vpop.f32.mrb[0].mxu0
  %1251 = vmatprep.mubr.bf16.mxu0 0
  %1252 = vmatmul.mubr.bf16.gmra.mrb[0].mxu0 %v1048
  %v1253 = vpop.f32.mrb[0].mxu0
  %v1254 = vadd.f32 %v1090, %v1253
  %v1255 = vpop.f32.mrb[0].mxu0
  %v1256 = vpop.f32.mrb[0].mxu0
  %v1257 = vadd.f32 %v1090, %v1256
  %v1258 = vpop.f32.mrb[0].mxu0
  %1259 = vmatprep.mubr.bf16.mxu0 0
  %1260 = vmatmul.mubr.bf16.gmra.mrb[0].mxu0 %v1049
  %v1261 = vpop.f32.mrb[0].mxu0
  %v1262 = vadd.f32 %v1090, %v1261
  %v1263 = vpop.f32.mrb[0].mxu0
  %v1264 = vpop.f32.mrb[0].mxu0
  %v1265 = vadd.f32 %v1090, %v1264
  %v1266 = vpop.f32.mrb[0].mxu0
  %1267 = vmatprep.mubr.bf16.mxu0 0
  %1268 = vmatmul.mubr.bf16.gmra.mrb[0].mxu0 %v1050
  %v1269 = vpop.f32.mrb[0].mxu0
  %v1270 = vadd.f32 %v1090, %v1269
  %v1271 = vpop.f32.mrb[0].mxu0
  %v1272 = vpop.f32.mrb[0].mxu0
  %v1273 = vadd.f32 %v1090, %v1272
  %v1274 = vpop.f32.mrb[0].mxu0
  %1275 = vmatprep.mubr.bf16.mxu0 0
  %1276 = vmatmul.mubr.bf16.gmra.mrb[0].mxu0 %v1051
  %v1277 = vpop.f32.mrb[0].mxu0
  %v1278 = vadd.f32 %v1090, %v1277
  %v1279 = vpop.f32.mrb[0].mxu0
  %v1280 = vpop.f32.mrb[0].mxu0
  %v1281 = vadd.f32 %v1090, %v1280
  %v1282 = vpop.f32.mrb[0].mxu0
  %1283 = vmatprep.mubr.bf16.mxu0 0
  %1284 = vmatmul.mubr.bf16.gmra.mrb[0].mxu0 %v1052
  %v1285 = vpop.f32.mrb[0].mxu0
  %v1286 = vadd.f32 %v1090, %v1285
  %v1287 = vpop.f32.mrb[0].mxu0
  %v1288 = vpop.f32.mrb[0].mxu0
  %v1289 = vadd.f32 %v1090, %v1288
  %v1290 = vpop.f32.mrb[0].mxu0
  %1291 = vmatprep.mubr.bf16.mxu0 0
  %1292 = vmatmul.mubr.bf16.gmra.mrb[0].mxu0 %v1053
  %v1293 = vpop.f32.mrb[0].mxu0
  %v1294 = vadd.f32 %v1090, %v1293
  %v1295 = vpop.f32.mrb[0].mxu0
  %v1296 = vpop.f32.mrb[0].mxu0
  %v1297 = vadd.f32 %v1090, %v1296
  %v1298 = vpop.f32.mrb[0].mxu0
  %1299 = vmatprep.mubr.bf16.mxu0 0
  %1300 = vmatmul.mubr.bf16.gmra.mrb[0].mxu0 %v1054
  %v1301 = vpop.f32.mrb[0].mxu0
  %v1302 = vadd.f32 %v1090, %v1301
  %v1303 = vpop.f32.mrb[0].mxu0
  %v1304 = vpop.f32.mrb[0].mxu0
  %v1305 = vadd.f32 %v1090, %v1304
  %v1306 = vpop.f32.mrb[0].mxu0
  %1307 = vmatprep.mubr.bf16.mxu0 0
  %1308 = vmatmul.mubr.bf16.gmra.mrb[0].mxu0 %v1055
  %v1309 = vpop.f32.mrb[0].mxu0
  %v1310 = vadd.f32 %v1090, %v1309
  %v1311 = vpop.f32.mrb[0].mxu0
  %v1312 = vpop.f32.mrb[0].mxu0
  %v1313 = vadd.f32 %v1090, %v1312
  %v1314 = vpop.f32.mrb[0].mxu0
  %1315 = vmatprep.mubr.bf16.mxu0 0
  %1316 = vmatmul.mubr.bf16.gmra.mrb[0].mxu0 %v1056
  %v1317 = vpop.f32.mrb[0].mxu0
  %v1318 = vadd.f32 %v1090, %v1317
  %v1319 = vpop.f32.mrb[0].mxu0
  %v1320 = vpop.f32.mrb[0].mxu0
  %v1321 = vadd.f32 %v1090, %v1320
  %v1322 = vpop.f32.mrb[0].mxu0
  %1323 = vmatprep.mubr.bf16.mxu0 0
  %1324 = vmatmul.mubr.bf16.gmra.mrb[0].mxu0 %v1057
  %v1325 = vpop.f32.mrb[0].mxu0
  %v1326 = vadd.f32 %v1090, %v1325
  %v1327 = vpop.f32.mrb[0].mxu0
  %v1328 = vpop.f32.mrb[0].mxu0
  %v1329 = vadd.f32 %v1090, %v1328
  %v1330 = vpop.f32.mrb[0].mxu0
  %1331 = vmatprep.mubr.bf16.mxu0 0
  %1332 = vmatmul.mubr.bf16.gmra.mrb[0].mxu0 %v1058
  %v1333 = vpop.f32.mrb[0].mxu0
  %v1334 = vadd.f32 %v1090, %v1333
  %v1335 = vpop.f32.mrb[0].mxu0
  %v1336 = vpop.f32.mrb[0].mxu0
  %v1337 = vadd.f32 %v1090, %v1336
  %v1338 = vpop.f32.mrb[0].mxu0
  %1339 = vmatprep.mubr.bf16.mxu0 0
  %1340 = vmatmul.mubr.bf16.gmra.mrb[0].mxu0 %v1059
  %v1341 = vpop.f32.mrb[0].mxu0
  %v1342 = vadd.f32 %v1090, %v1341
  %v1343 = vpop.f32.mrb[0].mxu0
  %v1344 = vpop.f32.mrb[0].mxu0
  %v1345 = vadd.f32 %v1090, %v1344
  %v1346 = vpop.f32.mrb[0].mxu0
  %1347 = vmatprep.mubr.bf16.mxu0 0
  %1348 = vmatmul.mubr.bf16.gmra.mrb[0].mxu0 %v1060
  %v1349 = vpop.f32.mrb[0].mxu0
  %v1350 = vadd.f32 %v1090, %v1349
  %v1351 = vpop.f32.mrb[0].mxu0
  %v1352 = vpop.f32.mrb[0].mxu0
  %v1353 = vadd.f32 %v1090, %v1352
  %v1354 = vpop.f32.mrb[0].mxu0
  %1355 = vmatprep.mubr.bf16.mxu0 0
  %1356 = vmatmul.mubr.bf16.gmra.mrb[0].mxu0 %v1061
  %v1357 = vpop.f32.mrb[0].mxu0
  %v1358 = vadd.f32 %v1090, %v1357
  %v1359 = vpop.f32.mrb[0].mxu0
  %v1360 = vpop.f32.mrb[0].mxu0
  %v1361 = vadd.f32 %v1090, %v1360
  %v1362 = vpop.f32.mrb[0].mxu0
  %1363 = vmatprep.mubr.bf16.mxu0 0
  %1364 = vmatmul.mubr.bf16.gmra.mrb[0].mxu0 %v1062
  %v1365 = vpop.f32.mrb[0].mxu0
  %v1366 = vadd.f32 %v1090, %v1365
  %v1367 = vpop.f32.mrb[0].mxu0
  %v1368 = vpop.f32.mrb[0].mxu0
  %v1369 = vadd.f32 %v1090, %v1368
  %v1370 = vpop.f32.mrb[0].mxu0
  %1371 = vmatprep.mubr.bf16.mxu0 0
  %1372 = vmatmul.mubr.bf16.gmra.mrb[0].mxu0 %v1063
  %v1373 = vpop.f32.mrb[0].mxu0
  %v1374 = vadd.f32 %v1090, %v1373
  %v1375 = vpop.f32.mrb[0].mxu0
  %v1376 = vpop.f32.mrb[0].mxu0
  %v1377 = vadd.f32 %v1090, %v1376
  %v1378 = vpop.f32.mrb[0].mxu0
  %1379 = vmatprep.mubr.bf16.mxu0 0
  %1380 = vmatmul.mubr.bf16.gmra.mrb[0].mxu0 %v1064
  %v1381 = vpop.f32.mrb[0].mxu0
  %v1382 = vadd.f32 %v1090, %v1381
  %v1383 = vpop.f32.mrb[0].mxu0
  %v1384 = vpop.f32.mrb[0].mxu0
  %v1385 = vadd.f32 %v1090, %v1384
  %v1386 = vpop.f32.mrb[0].mxu0
  %1387 = vmatprep.mubr.bf16.mxu0 0
  %1388 = vmatmul.mubr.bf16.gmra.mrb[0].mxu0 %v1065
  %v1389 = vpop.f32.mrb[0].mxu0
  %v1390 = vadd.f32 %v1090, %v1389
  %v1391 = vpop.f32.mrb[0].mxu0
  %v1392 = vpop.f32.mrb[0].mxu0
  %v1393 = vadd.f32 %v1090, %v1392
  %v1394 = vpop.f32.mrb[0].mxu0
  %1395 = vmatprep.mubr.bf16.mxu0 0
  %1396 = vmatmul.mubr.bf16.gmra.mrb[0].mxu0 %v1066
  %v1397 = vpop.f32.mrb[0].mxu0
  %v1398 = vadd.f32 %v1090, %v1397
  %v1399 = vpop.f32.mrb[0].mxu0
  %v1400 = vpop.f32.mrb[0].mxu0
  %v1401 = vadd.f32 %v1090, %v1400
  %v1402 = vpop.f32.mrb[0].mxu0
  %1403 = vmatprep.mubr.bf16.mxu0 0
  %1404 = vmatmul.mubr.bf16.gmra.mrb[0].mxu0 %v1067
  %v1405 = vpop.f32.mrb[0].mxu0
  %v1406 = vadd.f32 %v1090, %v1405
  %v1407 = vpop.f32.mrb[0].mxu0
  %v1408 = vpop.f32.mrb[0].mxu0
  %v1409 = vadd.f32 %v1090, %v1408
  %v1410 = vpop.f32.mrb[0].mxu0
  %1411 = vmatprep.mubr.bf16.mxu0 0
  %1412 = vmatmul.mubr.bf16.gmra.mrb[0].mxu0 %v1068
  %v1413 = vpop.f32.mrb[0].mxu0
  %v1414 = vadd.f32 %v1090, %v1413
  %v1415 = vpop.f32.mrb[0].mxu0
  %v1416 = vpop.f32.mrb[0].mxu0
  %v1417 = vadd.f32 %v1090, %v1416
  %v1418 = vpop.f32.mrb[0].mxu0
  %1419 = vmatprep.mubr.bf16.mxu0 0
  %1420 = vmatmul.mubr.bf16.gmra.mrb[0].mxu0 %v1069
  %v1421 = vpop.f32.mrb[0].mxu0
  %v1422 = vadd.f32 %v1090, %v1421
  %v1423 = vpop.f32.mrb[0].mxu0
  %v1424 = vpop.f32.mrb[0].mxu0
  %v1425 = vadd.f32 %v1090, %v1424
  %v1426 = vpop.f32.mrb[0].mxu0
  %1427 = vdwg.mxu0
  %v1428 = vmax.f32 %v1174, 0.0
  %v1429 = vmax.f32 %v1177, 0.0
  %v1430 = vmax.f32 %v1182, 0.0
  %v1431 = vmax.f32 %v1185, 0.0
  %v1432 = vmax.f32 %v1190, 0.0
  %v1433 = vmax.f32 %v1193, 0.0
  %v1434 = vmax.f32 %v1198, 0.0
  %v1435 = vmax.f32 %v1201, 0.0
  %v1436 = vmax.f32 %v1206, 0.0
  %v1437 = vmax.f32 %v1209, 0.0
  %v1438 = vmax.f32 %v1214, 0.0
  %v1439 = vmax.f32 %v1217, 0.0
  %v1440 = vmax.f32 %v1222, 0.0
  %v1441 = vmax.f32 %v1225, 0.0
  %v1442 = vmax.f32 %v1230, 0.0
  %v1443 = vmax.f32 %v1233, 0.0
  %v1444 = vmax.f32 %v1238, 0.0
  %v1445 = vmax.f32 %v1241, 0.0
  %v1446 = vmax.f32 %v1246, 0.0
  %v1447 = vmax.f32 %v1249, 0.0
  %v1448 = vmax.f32 %v1254, 0.0
  %v1449 = vmax.f32 %v1257, 0.0
  %v1450 = vmax.f32 %v1262, 0.0
  %v1451 = vmax.f32 %v1265, 0.0
  %v1452 = vmax.f32 %v1270, 0.0
  %v1453 = vmax.f32 %v1273, 0.0
  %v1454 = vmax.f32 %v1278, 0.0
  %v1455 = vmax.f32 %v1281, 0.0
  %v1456 = vmax.f32 %v1286, 0.0
  %v1457 = vmax.f32 %v1289, 0.0
  %v1458 = vmax.f32 %v1294, 0.0
  %v1459 = vmax.f32 %v1297, 0.0
  %v1460 = vmax.f32 %v1302, 0.0
  %v1461 = vmax.f32 %v1305, 0.0
  %v1462 = vmax.f32 %v1310, 0.0
  %v1463 = vmax.f32 %v1313, 0.0
  %v1464 = vmax.f32 %v1318, 0.0
  %v1465 = vmax.f32 %v1321, 0.0
  %v1466 = vmax.f32 %v1326, 0.0
  %v1467 = vmax.f32 %v1329, 0.0
  %v1468 = vmax.f32 %v1334, 0.0
  %v1469 = vmax.f32 %v1337, 0.0
  %v1470 = vmax.f32 %v1342, 0.0
  %v1471 = vmax.f32 %v1345, 0.0
  %v1472 = vmax.f32 %v1350, 0.0
  %v1473 = vmax.f32 %v1353, 0.0
  %v1474 = vmax.f32 %v1358, 0.0
  %v1475 = vmax.f32 %v1361, 0.0
  %v1476 = vmax.f32 %v1366, 0.0
  %v1477 = vmax.f32 %v1369, 0.0
  %v1478 = vmax.f32 %v1374, 0.0
  %v1479 = vmax.f32 %v1377, 0.0
  %v1480 = vmax.f32 %v1382, 0.0
  %v1481 = vmax.f32 %v1385, 0.0
  %v1482 = vmax.f32 %v1390, 0.0
  %v1483 = vmax.f32 %v1393, 0.0
  %v1484 = vmax.f32 %v1398, 0.0
  %v1485 = vmax.f32 %v1401, 0.0
  %v1486 = vmax.f32 %v1406, 0.0
  %v1487 = vmax.f32 %v1409, 0.0
  %v1488 = vmax.f32 %v1414, 0.0
  %v1489 = vmax.f32 %v1417, 0.0
  %v1490 = vmax.f32 %v1422, 0.0
  %v1491 = vmax.f32 %v1425, 0.0
  %v1492 = vpack.c.bf16 %v1429, %v1428
  %v1493 = vpack.c.bf16 %v1431, %v1430
  %v1494 = vpack.c.bf16 %v1433, %v1432
  %v1495 = vpack.c.bf16 %v1435, %v1434
  %v1496 = vpack.c.bf16 %v1437, %v1436
  %v1497 = vpack.c.bf16 %v1439, %v1438
  %v1498 = vpack.c.bf16 %v1441, %v1440
  %v1499 = vpack.c.bf16 %v1443, %v1442
  %v1500 = vpack.c.bf16 %v1445, %v1444
  %v1501 = vpack.c.bf16 %v1447, %v1446
  %v1502 = vpack.c.bf16 %v1449, %v1448
  %v1503 = vpack.c.bf16 %v1451, %v1450
  %v1504 = vpack.c.bf16 %v1453, %v1452
  %v1505 = vpack.c.bf16 %v1455, %v1454
  %v1506 = vpack.c.bf16 %v1457, %v1456
  %v1507 = vpack.c.bf16 %v1459, %v1458
  %v1508 = vpack.c.bf16 %v1461, %v1460
  %v1509 = vpack.c.bf16 %v1463, %v1462
  %v1510 = vpack.c.bf16 %v1465, %v1464
  %v1511 = vpack.c.bf16 %v1467, %v1466
  %v1512 = vpack.c.bf16 %v1469, %v1468
  %v1513 = vpack.c.bf16 %v1471, %v1470
  %v1514 = vpack.c.bf16 %v1473, %v1472
  %v1515 = vpack.c.bf16 %v1475, %v1474
  %v1516 = vpack.c.bf16 %v1477, %v1476
  %v1517 = vpack.c.bf16 %v1479, %v1478
  %v1518 = vpack.c.bf16 %v1481, %v1480
  %v1519 = vpack.c.bf16 %v1483, %v1482
  %v1520 = vpack.c.bf16 %v1485, %v1484
  %v1521 = vpack.c.bf16 %v1487, %v1486
  %v1522 = vpack.c.bf16 %v1489, %v1488
  %v1523 = vpack.c.bf16 %v1491, %v1490
  %s1524 = scalar_lea.vmem %s2, 128
  %v1525 = vld [vmem:[%s1524] sm:$0xf]
  %v1526 = vld [vmem:[%s1524 + $0x4] sm:$0xf]
  %v1527 = vld [vmem:[%s1524 + $0x8] sm:$0xf]
  %v1528 = vld [vmem:[%s1524 + $0xc] sm:$0xf]
  %v1529 = vld [vmem:[%s1524 + $0x10] sm:$0xf]
  %v1530 = vld [vmem:[%s1524 + $0x14] sm:$0xf]
  %v1531 = vld [vmem:[%s1524 + $0x18] sm:$0xf]
  %v1532 = vld [vmem:[%s1524 + $0x1c] sm:$0xf]
  %v1533 = vld [vmem:[%s1524 + $0x20] sm:$0xf]
  %v1534 = vld [vmem:[%s1524 + $0x24] sm:$0xf]
  %v1535 = vld [vmem:[%s1524 + $0x28] sm:$0xf]
  %v1536 = vld [vmem:[%s1524 + $0x2c] sm:$0xf]
  %v1537 = vld [vmem:[%s1524 + $0x30] sm:$0xf]
  %v1538 = vld [vmem:[%s1524 + $0x34] sm:$0xf]
  %v1539 = vld [vmem:[%s1524 + $0x38] sm:$0xf]
  %v1540 = vld [vmem:[%s1524 + $0x3c] sm:$0xf]
  %v1541 = vlaneseq
  %v1542 = vshrl.u32 %v1541, 7
  %v1543 = vsub.s32 3, %v1542
  %v1544 = vrot.slane %v18, %v1543
  %v1561 = vunpack.c.l.b16 %v1525
  %v1562 = vunpack.c.l.b16 %v1526
  %v1563 = vunpack.c.l.b16 %v1527
  %v1564 = vunpack.c.l.b16 %v1528
  %v1565 = vunpack.c.l.b16 %v1529
  %v1566 = vunpack.c.l.b16 %v1530
  %v1567 = vunpack.c.l.b16 %v1531
  %v1568 = vunpack.c.l.b16 %v1532
  %v1569 = vunpack.c.l.b16 %v1533
  %v1570 = vunpack.c.l.b16 %v1534
  %v1571 = vunpack.c.l.b16 %v1535
  %v1572 = vunpack.c.l.b16 %v1536
  %v1573 = vunpack.c.l.b16 %v1537
  %v1574 = vunpack.c.l.b16 %v1538
  %v1575 = vunpack.c.l.b16 %v1539
  %v1576 = vunpack.c.l.b16 %v1540
  %v1577 = vpack.c.b16 %v1562, %v1561
  %v1578 = vpack.c.b16 %v1564, %v1563
  %v1579 = vpack.c.b16 %v1566, %v1565
  %v1580 = vpack.c.b16 %v1568, %v1567
  %v1581 = vpack.c.b16 %v1570, %v1569
  %v1582 = vpack.c.b16 %v1572, %v1571
  %v1583 = vpack.c.b16 %v1574, %v1573
  %v1584 = vpack.c.b16 %v1576, %v1575
  %1593 = vmatprep.subr.bf16.mxu0 0
  %1594 = vmatpush1.bf16.msra.mxu0 %v1577
  %1595 = vmatprep.subr.bf16.mxu0 0
  %1596 = vmatpush1.bf16.msra.mxu0 %v1578
  %1597 = vmatprep.subr.bf16.mxu0 0
  %1598 = vmatpush1.bf16.msra.mxu0 %v1579
  %1599 = vmatprep.subr.bf16.mxu0 0
  %1600 = vmatpush1.bf16.msra.mxu0 %v1580
  %1601 = vmatprep.subr.bf16.mxu0 0
  %1602 = vmatpush1.bf16.msra.mxu0 %v1581
  %1603 = vmatprep.subr.bf16.mxu0 0
  %1604 = vmatpush1.bf16.msra.mxu0 %v1582
  %1605 = vmatprep.subr.bf16.mxu0 0
  %1606 = vmatpush1.bf16.msra.mxu0 %v1583
  %1607 = vmatprep.subr.bf16.mxu0 0
  %1608 = vmatpush1.bf16.msra.mxu0 %v1584
  %1609 = vmatprep.subr.bf16.mxu0 0
  %1610 = vmatpush1.bf16.msra.mxu0 0
  %1611 = vmatprep.subr.bf16.mxu0 0
  %1612 = vmatpush1.bf16.msra.mxu0 0
  %1613 = vmatprep.subr.bf16.mxu0 0
  %1614 = vmatpush1.bf16.msra.mxu0 0
  %1615 = vmatprep.subr.bf16.mxu0 0
  %1616 = vmatpush1.bf16.msra.mxu0 0
  %1617 = vmatprep.subr.bf16.mxu0 0
  %1618 = vmatpush1.bf16.msra.mxu0 0
  %1619 = vmatprep.subr.bf16.mxu0 0
  %1620 = vmatpush1.bf16.msra.mxu0 0
  %1621 = vmatprep.subr.bf16.mxu0 0
  %1622 = vmatpush1.bf16.msra.mxu0 0
  %1623 = vmatprep.subr.bf16.mxu0 0
  %1624 = vmatpush1.bf16.msra.mxu0 0
  %1625 = vmatprep.mubr.bf16.mxu0 0
  %1626 = vmatmul.mubr.bf16.gmra.mrb[0].mxu0 %v1492
  %v1627 = vpop.f32.mrb[0].mxu0
  %v1628 = vadd.f32 %v1544, %v1627
  %v1629 = vpop.f32.mrb[0].mxu0
  %v1630 = vpop.f32.mrb[0].mxu0
  %v1631 = vadd.f32 %v1544, %v1630
  %v1632 = vpop.f32.mrb[0].mxu0
  %1633 = vmatprep.mubr.bf16.mxu0 0
  %1634 = vmatmul.mubr.bf16.gmra.mrb[0].mxu0 %v1493
  %v1635 = vpop.f32.mrb[0].mxu0
  %v1636 = vadd.f32 %v1544, %v1635
  %v1637 = vpop.f32.mrb[0].mxu0
  %v1638 = vpop.f32.mrb[0].mxu0
  %v1639 = vadd.f32 %v1544, %v1638
  %v1640 = vpop.f32.mrb[0].mxu0
  %1641 = vmatprep.mubr.bf16.mxu0 0
  %1642 = vmatmul.mubr.bf16.gmra.mrb[0].mxu0 %v1494
  %v1643 = vpop.f32.mrb[0].mxu0
  %v1644 = vadd.f32 %v1544, %v1643
  %v1645 = vpop.f32.mrb[0].mxu0
  %v1646 = vpop.f32.mrb[0].mxu0
  %v1647 = vadd.f32 %v1544, %v1646
  %v1648 = vpop.f32.mrb[0].mxu0
  %1649 = vmatprep.mubr.bf16.mxu0 0
  %1650 = vmatmul.mubr.bf16.gmra.mrb[0].mxu0 %v1495
  %v1651 = vpop.f32.mrb[0].mxu0
  %v1652 = vadd.f32 %v1544, %v1651
  %v1653 = vpop.f32.mrb[0].mxu0
  %v1654 = vpop.f32.mrb[0].mxu0
  %v1655 = vadd.f32 %v1544, %v1654
  %v1656 = vpop.f32.mrb[0].mxu0
  %1657 = vmatprep.mubr.bf16.mxu0 0
  %1658 = vmatmul.mubr.bf16.gmra.mrb[0].mxu0 %v1496
  %v1659 = vpop.f32.mrb[0].mxu0
  %v1660 = vadd.f32 %v1544, %v1659
  %v1661 = vpop.f32.mrb[0].mxu0
  %v1662 = vpop.f32.mrb[0].mxu0
  %v1663 = vadd.f32 %v1544, %v1662
  %v1664 = vpop.f32.mrb[0].mxu0
  %1665 = vmatprep.mubr.bf16.mxu0 0
  %1666 = vmatmul.mubr.bf16.gmra.mrb[0].mxu0 %v1497
  %v1667 = vpop.f32.mrb[0].mxu0
  %v1668 = vadd.f32 %v1544, %v1667
  %v1669 = vpop.f32.mrb[0].mxu0
  %v1670 = vpop.f32.mrb[0].mxu0
  %v1671 = vadd.f32 %v1544, %v1670
  %v1672 = vpop.f32.mrb[0].mxu0
  %1673 = vmatprep.mubr.bf16.mxu0 0
  %1674 = vmatmul.mubr.bf16.gmra.mrb[0].mxu0 %v1498
  %v1675 = vpop.f32.mrb[0].mxu0
  %v1676 = vadd.f32 %v1544, %v1675
  %v1677 = vpop.f32.mrb[0].mxu0
  %v1678 = vpop.f32.mrb[0].mxu0
  %v1679 = vadd.f32 %v1544, %v1678
  %v1680 = vpop.f32.mrb[0].mxu0
  %1681 = vmatprep.mubr.bf16.mxu0 0
  %1682 = vmatmul.mubr.bf16.gmra.mrb[0].mxu0 %v1499
  %v1683 = vpop.f32.mrb[0].mxu0
  %v1684 = vadd.f32 %v1544, %v1683
  %v1685 = vpop.f32.mrb[0].mxu0
  %v1686 = vpop.f32.mrb[0].mxu0
  %v1687 = vadd.f32 %v1544, %v1686
  %v1688 = vpop.f32.mrb[0].mxu0
  %1689 = vmatprep.mubr.bf16.mxu0 0
  %1690 = vmatmul.mubr.bf16.gmra.mrb[0].mxu0 %v1500
  %v1691 = vpop.f32.mrb[0].mxu0
  %v1692 = vadd.f32 %v1544, %v1691
  %v1693 = vpop.f32.mrb[0].mxu0
  %v1694 = vpop.f32.mrb[0].mxu0
  %v1695 = vadd.f32 %v1544, %v1694
  %v1696 = vpop.f32.mrb[0].mxu0
  %1697 = vmatprep.mubr.bf16.mxu0 0
  %1698 = vmatmul.mubr.bf16.gmra.mrb[0].mxu0 %v1501
  %v1699 = vpop.f32.mrb[0].mxu0
  %v1700 = vadd.f32 %v1544, %v1699
  %v1701 = vpop.f32.mrb[0].mxu0
  %v1702 = vpop.f32.mrb[0].mxu0
  %v1703 = vadd.f32 %v1544, %v1702
  %v1704 = vpop.f32.mrb[0].mxu0
  %1705 = vmatprep.mubr.bf16.mxu0 0
  %1706 = vmatmul.mubr.bf16.gmra.mrb[0].mxu0 %v1502
  %v1707 = vpop.f32.mrb[0].mxu0
  %v1708 = vadd.f32 %v1544, %v1707
  %v1709 = vpop.f32.mrb[0].mxu0
  %v1710 = vpop.f32.mrb[0].mxu0
  %v1711 = vadd.f32 %v1544, %v1710
  %v1712 = vpop.f32.mrb[0].mxu0
  %1713 = vmatprep.mubr.bf16.mxu0 0
  %1714 = vmatmul.mubr.bf16.gmra.mrb[0].mxu0 %v1503
  %v1715 = vpop.f32.mrb[0].mxu0
  %v1716 = vadd.f32 %v1544, %v1715
  %v1717 = vpop.f32.mrb[0].mxu0
  %v1718 = vpop.f32.mrb[0].mxu0
  %v1719 = vadd.f32 %v1544, %v1718
  %v1720 = vpop.f32.mrb[0].mxu0
  %1721 = vmatprep.mubr.bf16.mxu0 0
  %1722 = vmatmul.mubr.bf16.gmra.mrb[0].mxu0 %v1504
  %v1723 = vpop.f32.mrb[0].mxu0
  %v1724 = vadd.f32 %v1544, %v1723
  %v1725 = vpop.f32.mrb[0].mxu0
  %v1726 = vpop.f32.mrb[0].mxu0
  %v1727 = vadd.f32 %v1544, %v1726
  %v1728 = vpop.f32.mrb[0].mxu0
  %1729 = vmatprep.mubr.bf16.mxu0 0
  %1730 = vmatmul.mubr.bf16.gmra.mrb[0].mxu0 %v1505
  %v1731 = vpop.f32.mrb[0].mxu0
  %v1732 = vadd.f32 %v1544, %v1731
  %v1733 = vpop.f32.mrb[0].mxu0
  %v1734 = vpop.f32.mrb[0].mxu0
  %v1735 = vadd.f32 %v1544, %v1734
  %v1736 = vpop.f32.mrb[0].mxu0
  %1737 = vmatprep.mubr.bf16.mxu0 0
  %1738 = vmatmul.mubr.bf16.gmra.mrb[0].mxu0 %v1506
  %v1739 = vpop.f32.mrb[0].mxu0
  %v1740 = vadd.f32 %v1544, %v1739
  %v1741 = vpop.f32.mrb[0].mxu0
  %v1742 = vpop.f32.mrb[0].mxu0
  %v1743 = vadd.f32 %v1544, %v1742
  %v1744 = vpop.f32.mrb[0].mxu0
  %1745 = vmatprep.mubr.bf16.mxu0 0
  %1746 = vmatmul.mubr.bf16.gmra.mrb[0].mxu0 %v1507
  %v1747 = vpop.f32.mrb[0].mxu0
  %v1748 = vadd.f32 %v1544, %v1747
  %v1749 = vpop.f32.mrb[0].mxu0
  %v1750 = vpop.f32.mrb[0].mxu0
  %v1751 = vadd.f32 %v1544, %v1750
  %v1752 = vpop.f32.mrb[0].mxu0
  %1753 = vmatprep.mubr.bf16.mxu0 0
  %1754 = vmatmul.mubr.bf16.gmra.mrb[0].mxu0 %v1508
  %v1755 = vpop.f32.mrb[0].mxu0
  %v1756 = vadd.f32 %v1544, %v1755
  %v1757 = vpop.f32.mrb[0].mxu0
  %v1758 = vpop.f32.mrb[0].mxu0
  %v1759 = vadd.f32 %v1544, %v1758
  %v1760 = vpop.f32.mrb[0].mxu0
  %1761 = vmatprep.mubr.bf16.mxu0 0
  %1762 = vmatmul.mubr.bf16.gmra.mrb[0].mxu0 %v1509
  %v1763 = vpop.f32.mrb[0].mxu0
  %v1764 = vadd.f32 %v1544, %v1763
  %v1765 = vpop.f32.mrb[0].mxu0
  %v1766 = vpop.f32.mrb[0].mxu0
  %v1767 = vadd.f32 %v1544, %v1766
  %v1768 = vpop.f32.mrb[0].mxu0
  %1769 = vmatprep.mubr.bf16.mxu0 0
  %1770 = vmatmul.mubr.bf16.gmra.mrb[0].mxu0 %v1510
  %v1771 = vpop.f32.mrb[0].mxu0
  %v1772 = vadd.f32 %v1544, %v1771
  %v1773 = vpop.f32.mrb[0].mxu0
  %v1774 = vpop.f32.mrb[0].mxu0
  %v1775 = vadd.f32 %v1544, %v1774
  %v1776 = vpop.f32.mrb[0].mxu0
  %1777 = vmatprep.mubr.bf16.mxu0 0
  %1778 = vmatmul.mubr.bf16.gmra.mrb[0].mxu0 %v1511
  %v1779 = vpop.f32.mrb[0].mxu0
  %v1780 = vadd.f32 %v1544, %v1779
  %v1781 = vpop.f32.mrb[0].mxu0
  %v1782 = vpop.f32.mrb[0].mxu0
  %v1783 = vadd.f32 %v1544, %v1782
  %v1784 = vpop.f32.mrb[0].mxu0
  %1785 = vmatprep.mubr.bf16.mxu0 0
  %1786 = vmatmul.mubr.bf16.gmra.mrb[0].mxu0 %v1512
  %v1787 = vpop.f32.mrb[0].mxu0
  %v1788 = vadd.f32 %v1544, %v1787
  %v1789 = vpop.f32.mrb[0].mxu0
  %v1790 = vpop.f32.mrb[0].mxu0
  %v1791 = vadd.f32 %v1544, %v1790
  %v1792 = vpop.f32.mrb[0].mxu0
  %1793 = vmatprep.mubr.bf16.mxu0 0
  %1794 = vmatmul.mubr.bf16.gmra.mrb[0].mxu0 %v1513
  %v1795 = vpop.f32.mrb[0].mxu0
  %v1796 = vadd.f32 %v1544, %v1795
  %v1797 = vpop.f32.mrb[0].mxu0
  %v1798 = vpop.f32.mrb[0].mxu0
  %v1799 = vadd.f32 %v1544, %v1798
  %v1800 = vpop.f32.mrb[0].mxu0
  %1801 = vmatprep.mubr.bf16.mxu0 0
  %1802 = vmatmul.mubr.bf16.gmra.mrb[0].mxu0 %v1514
  %v1803 = vpop.f32.mrb[0].mxu0
  %v1804 = vadd.f32 %v1544, %v1803
  %v1805 = vpop.f32.mrb[0].mxu0
  %v1806 = vpop.f32.mrb[0].mxu0
  %v1807 = vadd.f32 %v1544, %v1806
  %v1808 = vpop.f32.mrb[0].mxu0
  %1809 = vmatprep.mubr.bf16.mxu0 0
  %1810 = vmatmul.mubr.bf16.gmra.mrb[0].mxu0 %v1515
  %v1811 = vpop.f32.mrb[0].mxu0
  %v1812 = vadd.f32 %v1544, %v1811
  %v1813 = vpop.f32.mrb[0].mxu0
  %v1814 = vpop.f32.mrb[0].mxu0
  %v1815 = vadd.f32 %v1544, %v1814
  %v1816 = vpop.f32.mrb[0].mxu0
  %1817 = vmatprep.mubr.bf16.mxu0 0
  %1818 = vmatmul.mubr.bf16.gmra.mrb[0].mxu0 %v1516
  %v1819 = vpop.f32.mrb[0].mxu0
  %v1820 = vadd.f32 %v1544, %v1819
  %v1821 = vpop.f32.mrb[0].mxu0
  %v1822 = vpop.f32.mrb[0].mxu0
  %v1823 = vadd.f32 %v1544, %v1822
  %v1824 = vpop.f32.mrb[0].mxu0
  %1825 = vmatprep.mubr.bf16.mxu0 0
  %1826 = vmatmul.mubr.bf16.gmra.mrb[0].mxu0 %v1517
  %v1827 = vpop.f32.mrb[0].mxu0
  %v1828 = vadd.f32 %v1544, %v1827
  %v1829 = vpop.f32.mrb[0].mxu0
  %v1830 = vpop.f32.mrb[0].mxu0
  %v1831 = vadd.f32 %v1544, %v1830
  %v1832 = vpop.f32.mrb[0].mxu0
  %1833 = vmatprep.mubr.bf16.mxu0 0
  %1834 = vmatmul.mubr.bf16.gmra.mrb[0].mxu0 %v1518
  %v1835 = vpop.f32.mrb[0].mxu0
  %v1836 = vadd.f32 %v1544, %v1835
  %v1837 = vpop.f32.mrb[0].mxu0
  %v1838 = vpop.f32.mrb[0].mxu0
  %v1839 = vadd.f32 %v1544, %v1838
  %v1840 = vpop.f32.mrb[0].mxu0
  %1841 = vmatprep.mubr.bf16.mxu0 0
  %1842 = vmatmul.mubr.bf16.gmra.mrb[0].mxu0 %v1519
  %v1843 = vpop.f32.mrb[0].mxu0
  %v1844 = vadd.f32 %v1544, %v1843
  %v1845 = vpop.f32.mrb[0].mxu0
  %v1846 = vpop.f32.mrb[0].mxu0
  %v1847 = vadd.f32 %v1544, %v1846
  %v1848 = vpop.f32.mrb[0].mxu0
  %1849 = vmatprep.mubr.bf16.mxu0 0
  %1850 = vmatmul.mubr.bf16.gmra.mrb[0].mxu0 %v1520
  %v1851 = vpop.f32.mrb[0].mxu0
  %v1852 = vadd.f32 %v1544, %v1851
  %v1853 = vpop.f32.mrb[0].mxu0
  %v1854 = vpop.f32.mrb[0].mxu0
  %v1855 = vadd.f32 %v1544, %v1854
  %v1856 = vpop.f32.mrb[0].mxu0
  %1857 = vmatprep.mubr.bf16.mxu0 0
  %1858 = vmatmul.mubr.bf16.gmra.mrb[0].mxu0 %v1521
  %v1859 = vpop.f32.mrb[0].mxu0
  %v1860 = vadd.f32 %v1544, %v1859
  %v1861 = vpop.f32.mrb[0].mxu0
  %v1862 = vpop.f32.mrb[0].mxu0
  %v1863 = vadd.f32 %v1544, %v1862
  %v1864 = vpop.f32.mrb[0].mxu0
  %1865 = vmatprep.mubr.bf16.mxu0 0
  %1866 = vmatmul.mubr.bf16.gmra.mrb[0].mxu0 %v1522
  %v1867 = vpop.f32.mrb[0].mxu0
  %v1868 = vadd.f32 %v1544, %v1867
  %v1869 = vpop.f32.mrb[0].mxu0
  %v1870 = vpop.f32.mrb[0].mxu0
  %v1871 = vadd.f32 %v1544, %v1870
  %v1872 = vpop.f32.mrb[0].mxu0
  %1873 = vmatprep.mubr.bf16.mxu0 0
  %1874 = vmatmul.mubr.bf16.gmra.mrb[0].mxu0 %v1523
  %v1875 = vpop.f32.mrb[0].mxu0
  %v1876 = vadd.f32 %v1544, %v1875
  %v1877 = vpop.f32.mrb[0].mxu0
  %v1878 = vpop.f32.mrb[0].mxu0
  %v1879 = vadd.f32 %v1544, %v1878
  %v1880 = vpop.f32.mrb[0].mxu0
  %1881 = vdwg.mxu0
  %1882 = vst [vmem:[%s4] sm:$0xff] %v1628
  %1883 = vst [vmem:[%s4 + $0x8] sm:$0xff] %v1631
  %1884 = vst [vmem:[%s4 + $0x10] sm:$0xff] %v1636
  %1885 = vst [vmem:[%s4 + $0x18] sm:$0xff] %v1639
  %1886 = vst [vmem:[%s4 + $0x20] sm:$0xff] %v1644
  %1887 = vst [vmem:[%s4 + $0x28] sm:$0xff] %v1647
  %1888 = vst [vmem:[%s4 + $0x30] sm:$0xff] %v1652
  %1889 = vst [vmem:[%s4 + $0x38] sm:$0xff] %v1655
  %1890 = vst [vmem:[%s4 + $0x40] sm:$0xff] %v1660
  %1891 = vst [vmem:[%s4 + $0x48] sm:$0xff] %v1663
  %1892 = vst [vmem:[%s4 + $0x50] sm:$0xff] %v1668
  %1893 = vst [vmem:[%s4 + $0x58] sm:$0xff] %v1671
  %1894 = vst [vmem:[%s4 + $0x60] sm:$0xff] %v1676
  %1895 = vst [vmem:[%s4 + $0x68] sm:$0xff] %v1679
  %1896 = vst [vmem:[%s4 + $0x70] sm:$0xff] %v1684
  %1897 = vst [vmem:[%s4 + $0x78] sm:$0xff] %v1687
  %1898 = vst [vmem:[%s4 + $0x80] sm:$0xff] %v1692
  %1899 = vst [vmem:[%s4 + $0x88] sm:$0xff] %v1695
  %1900 = vst [vmem:[%s4 + $0x90] sm:$0xff] %v1700
  %1901 = vst [vmem:[%s4 + $0x98] sm:$0xff] %v1703
  %1902 = vst [vmem:[%s4 + $0xa0] sm:$0xff] %v1708
  %1903 = vst [vmem:[%s4 + $0xa8] sm:$0xff] %v1711
  %1904 = vst [vmem:[%s4 + $0xb0] sm:$0xff] %v1716
  %1905 = vst [vmem:[%s4 + $0xb8] sm:$0xff] %v1719
  %1906 = vst [vmem:[%s4 + $0xc0] sm:$0xff] %v1724
  %1907 = vst [vmem:[%s4 + $0xc8] sm:$0xff] %v1727
  %1908 = vst [vmem:[%s4 + $0xd0] sm:$0xff] %v1732
  %1909 = vst [vmem:[%s4 + $0xd8] sm:$0xff] %v1735
  %1910 = vst [vmem:[%s4 + $0xe0] sm:$0xff] %v1740
  %1911 = vst [vmem:[%s4 + $0xe8] sm:$0xff] %v1743
  %1912 = vst [vmem:[%s4 + $0xf0] sm:$0xff] %v1748
  %1913 = vst [vmem:[%s4 + $0xf8] sm:$0xff] %v1751
  %1914 = vst [vmem:[%s4 + $0x100] sm:$0xff] %v1756
  %1915 = vst [vmem:[%s4 + $0x108] sm:$0xff] %v1759
  %1916 = vst [vmem:[%s4 + $0x110] sm:$0xff] %v1764
  %1917 = vst [vmem:[%s4 + $0x118] sm:$0xff] %v1767
  %1918 = vst [vmem:[%s4 + $0x120] sm:$0xff] %v1772
  %1919 = vst [vmem:[%s4 + $0x128] sm:$0xff] %v1775
  %1920 = vst [vmem:[%s4 + $0x130] sm:$0xff] %v1780
  %1921 = vst [vmem:[%s4 + $0x138] sm:$0xff] %v1783
  %1922 = vst [vmem:[%s4 + $0x140] sm:$0xff] %v1788
  %1923 = vst [vmem:[%s4 + $0x148] sm:$0xff] %v1791
  %1924 = vst [vmem:[%s4 + $0x150] sm:$0xff] %v1796
  %1925 = vst [vmem:[%s4 + $0x158] sm:$0xff] %v1799
  %1926 = vst [vmem:[%s4 + $0x160] sm:$0xff] %v1804
  %1927 = vst [vmem:[%s4 + $0x168] sm:$0xff] %v1807
  %1928 = vst [vmem:[%s4 + $0x170] sm:$0xff] %v1812
  %1929 = vst [vmem:[%s4 + $0x178] sm:$0xff] %v1815
  %1930 = vst [vmem:[%s4 + $0x180] sm:$0xff] %v1820
  %1931 = vst [vmem:[%s4 + $0x188] sm:$0xff] %v1823
  %1932 = vst [vmem:[%s4 + $0x190] sm:$0xff] %v1828
  %1933 = vst [vmem:[%s4 + $0x198] sm:$0xff] %v1831
  %1934 = vst [vmem:[%s4 + $0x1a0] sm:$0xff] %v1836
  %1935 = vst [vmem:[%s4 + $0x1a8] sm:$0xff] %v1839
  %1936 = vst [vmem:[%s4 + $0x1b0] sm:$0xff] %v1844
  %1937 = vst [vmem:[%s4 + $0x1b8] sm:$0xff] %v1847
  %1938 = vst [vmem:[%s4 + $0x1c0] sm:$0xff] %v1852
  %1939 = vst [vmem:[%s4 + $0x1c8] sm:$0xff] %v1855
  %1940 = vst [vmem:[%s4 + $0x1d0] sm:$0xff] %v1860
  %1941 = vst [vmem:[%s4 + $0x1d8] sm:$0xff] %v1863
  %1942 = vst [vmem:[%s4 + $0x1e0] sm:$0xff] %v1868
  %1943 = vst [vmem:[%s4 + $0x1e8] sm:$0xff] %v1871
  %1944 = vst [vmem:[%s4 + $0x1f0] sm:$0xff] %v1876
  %1945 = vst [vmem:[%s4 + $0x1f8] sm:$0xff] %v1879
  // Predicated region
  $region18: #{mlp_forward.1} parent=0 // pred_check
    _
  $region19: #{mlp_forward.1} parent=0 // pred_check_branch
    %1947 = sbr.rel (0) target = $region21
  $region20: #{mlp_forward.1} parent=0 // pred_region
    _
  $region21: #{mlp_forward.1} parent=0 // pred_fallthru
    _
  // Predicated region
  $region22: #{mlp_forward.1} parent=0 // pred_check
    _
  $region23: #{mlp_forward.1} parent=0 // pred_check_branch
    %1949 = sbr.rel (0) target = $region25
  $region24: #{mlp_forward.1} parent=0 // pred_region
    _
  $region25: #{mlp_forward.1} parent=0 // pred_fallthru
    _

</llo_original>
